<compile_context>
chip_gen: v6e
topology: v6e:2x2x1
jax: 0.10.0
libtpu: 0.0.40
codegen_flags: <defaults>
</compile_context>

<pallas_src>
import math

import jax
import jax.numpy as jnp
from jax.experimental import pallas as pl
from jax.experimental.pallas import tpu as pltpu


# ----------------------------------------------------------------------------
# Helpers (all plain VPU/EUP ops, guaranteed to lower).
# ----------------------------------------------------------------------------
def _gelu_exact(x):
    # torch nn.GELU default (exact erf form).
    return 0.5 * x * (1.0 + jax.lax.erf(x * (1.0 / math.sqrt(2.0))))


def _atan2(y, x):
    # TODO(synk): lax.atan2 has no guaranteed Mosaic lowering; implemented
    # here with range reduction + a Cephes-style odd polynomial (~1e-7 err),
    # using only mul/add/div/select which always lower.
    ax = jnp.abs(x)
    ay = jnp.abs(y)
    swap = ay > ax
    num = jnp.where(swap, ax, ay)
    den = jnp.where(swap, ay, ax)
    t = num / jnp.maximum(den, 1e-30)           # t in [0, 1]
    # atan on [0, 1]: reduce t > tan(pi/8) via atan(t) = pi/4 + atan((t-1)/(t+1))
    red = t > 0.4142135623730951
    u = jnp.where(red, (t - 1.0) / (t + 1.0), t)
    z = u * u
    p = ((8.05374449538e-2 * z - 1.38776856032e-1) * z
         + 1.99777106478e-1) * z - 3.33329491539e-1
    a = p * z * u + u
    a = jnp.where(red, 0.7853981633974483 + a, a)
    a = jnp.where(swap, 1.5707963267948966 - a, a)
    a = jnp.where(x < 0.0, jnp.float32(math.pi) - a, a)
    return jnp.where(y < 0.0, -a, a)


# ----------------------------------------------------------------------------
# Fused kernel: conv heads -> spatial softmax -> per-joint stats -> atan2 ->
# AttentionFusion MLP -> gated output.  One batch tile per grid step.
# ----------------------------------------------------------------------------
def fused_head_kernel(x9_ref, wc_ref, bc_ref, w2_ref, b2_ref,
                      fw1_ref, fb1_ref, fw2_ref, fb2_ref, o_ref):
    TB, HW, K9 = x9_ref.shape            # batch tile, H*W, 9*C
    CO1 = w2_ref.shape[0]                # 256 (orientation conv1 channels)
    NJ = o_ref.shape[-1]                 # 14 joints

    # --- fused 3x3 convs: one big MXU matmul on the im2col'ed input --------
    x = x9_ref[...].reshape(TB * HW, K9)
    acc = jnp.dot(x, wc_ref[...], preferred_element_type=jnp.float32)
    acc = acc + bc_ref[...]                          # [TB*HW, CO1+NJ]

    a1 = acc[:, 0:CO1]                               # orientation conv1 (lane-aligned)
    hml = acc[:, CO1:CO1 + NJ]                       # heatmap logits

    # --- orientation head: GELU + 1x1 conv (cos cols 0..NJ-1, sin NJ..2NJ-1)
    h = _gelu_exact(a1)
    orient = jnp.dot(h, w2_ref[...], preferred_element_type=jnp.float32)
    orient = orient + b2_ref[...]                    # [TB*HW, 2*NJ]

    # --- per-batch spatial softmax + heatmap-weighted stats (2D reductions) -
    cos_l, sin_l, mean_l, max_l = [], [], [], []
    for bidx in range(TB):
        r0 = bidx * HW
        hml_b = hml[r0:r0 + HW, :]                   # [HW, NJ]
        m = jnp.max(hml_b, axis=0, keepdims=True)
        e = jnp.exp(hml_b - m)
        inv = 1.0 / jnp.sum(e, axis=0, keepdims=True)
        hm_b = e * inv                               # spatial softmax [HW, NJ]

        cos_b = orient[r0:r0 + HW, 0:NJ]
        sin_b = orient[r0:r0 + HW, NJ:2 * NJ]
        cos_l.append(jnp.sum(hm_b * cos_b, axis=0, keepdims=True))
        sin_l.append(jnp.sum(hm_b * sin_b, axis=0, keepdims=True))
        mean_l.append(jnp.sum(hm_b, axis=0, keepdims=True) * (1.0 / HW))
        max_l.append(jnp.max(hm_b, axis=0, keepdims=True))

    cos_w = jnp.concatenate(cos_l, axis=0)           # [TB, NJ]
    sin_w = jnp.concatenate(sin_l, axis=0)
    hm_mean = jnp.concatenate(mean_l, axis=0)
    hm_max = jnp.concatenate(max_l, axis=0)

    # --- atan2 (VPU) + AttentionFusion epilogue -----------------------------
    a = _atan2(sin_w, cos_w)                         # angles  [TB, NJ]
    b = hm_mean
    c = hm_max

    hf = (jnp.dot(a, fw1_ref[0:NJ, :], preferred_element_type=jnp.float32)
          + jnp.dot(b, fw1_ref[NJ:2 * NJ, :], preferred_element_type=jnp.float32)
          + jnp.dot(c, fw1_ref[2 * NJ:3 * NJ, :], preferred_element_type=jnp.float32)
          + fb1_ref[...])
    hf = _gelu_exact(hf)
    logits = jnp.dot(hf, fw2_ref[...], preferred_element_type=jnp.float32)
    logits = logits + fb2_ref[...]                   # [TB, 3]

    lm = jnp.max(logits, axis=-1, keepdims=True)
    le = jnp.exp(logits - lm)
    wts = le / jnp.sum(le, axis=-1, keepdims=True)   # exact divide

    fused = wts[:, 0:1] * a + wts[:, 1:2] * b + wts[:, 2:3] * c
    o_ref[...] = fused.reshape(TB, 1, NJ).astype(o_ref.dtype)


# ----------------------------------------------------------------------------
# Full OrientationAwareHead forward (wrapper does layout prep / im2col only).
# ----------------------------------------------------------------------------
def orientation_aware_head(patch_emb, hw_size, p):
    B, L, C = patch_emb.shape
    H = W = hw_size
    assert L == H * W
    HW = H * W
    NJ = p["b_hm"].shape[0]          # 14
    CO1 = p["b_or1"].shape[0]        # 256
    FH = p["fb1"].shape[0]           # 32

    # im2col in the wrapper: lane-dense [B, HW, 9*C] (tap-major, then channel).
    feat = patch_emb.reshape(B, H, W, C)
    xp = jnp.pad(feat, ((0, 0), (1, 1), (1, 1), (0, 0)))
    taps = [xp[:, ky:ky + H, kx:kx + W, :].reshape(B, HW, C)
            for ky in range(3) for kx in range(3)]
    x9 = jnp.concatenate(taps, axis=-1)              # [B, HW, 9C]

    # Fused conv weight: rows ordered (ky, kx, c); columns = [orient1 | heatmap].
    w_or1 = jnp.transpose(p["w_or1"], (2, 3, 1, 0)).reshape(9 * C, CO1)
    w_hm = jnp.transpose(p["w_hm"], (2, 3, 1, 0)).reshape(9 * C, NJ)
    w_conv = jnp.concatenate([w_or1, w_hm], axis=1)               # [9C, CO1+NJ]
    b_conv = jnp.concatenate([p["b_or1"], p["b_hm"]]).reshape(1, CO1 + NJ)

    # 1x1 conv weight; permute output channels cos-first, sin-second.
    perm = jnp.concatenate([jnp.arange(0, 2 * NJ, 2), jnp.arange(1, 2 * NJ, 2)])
    w_or2 = jnp.transpose(p["w_or2"][:, :, 0, 0], (1, 0))[:, perm]  # [CO1, 2NJ]
    b_or2 = p["b_or2"][perm].reshape(1, 2 * NJ)

    # AttentionFusion weights.
    fw1 = jnp.transpose(p["fw1"], (1, 0))            # [3*NJ, 32]
    fb1 = p["fb1"].reshape(1, FH)
    fw2 = jnp.transpose(p["fw2"], (1, 0))            # [32, 3]
    fb2 = p["fb2"].reshape(1, 3)

    # Batch tile: largest divisor of B up to 8 that still leaves >= 2 grid
    # steps (keeps both v7x TensorCores busy; v5e/v6e unaffected).
    cap = min(8, max(1, B // 2))
    TB = 1
    for d in range(cap, 0, -1):
        if B % d == 0:
            TB = d
            break
    grid = (B // TB,)

    const = lambda shape: pl.BlockSpec(shape, lambda i: tuple(0 for _ in shape))

    out = pl.pallas_call(
        fused_head_kernel,
        out_shape=jax.ShapeDtypeStruct((B, 1, NJ), jnp.float32),
        grid=grid,
        in_specs=[
            pl.BlockSpec((TB, HW, 9 * C), lambda i: (i, 0, 0)),
            const((9 * C, CO1 + NJ)),
            const((1, CO1 + NJ)),
            const((CO1, 2 * NJ)),
            const((1, 2 * NJ)),
            const((3 * NJ, FH)),
            const((1, FH)),
            const((FH, 3)),
            const((1, 3)),
        ],
        out_specs=pl.BlockSpec((TB, 1, NJ), lambda i: (i, 0, 0)),
        compiler_params=pltpu.CompilerParams(dimension_semantics=("parallel",)),
    )(x9, w_conv, b_conv, w_or2, b_or2, fw1, fb1, fw2, fb2)

    return out[:, 0, :]


# ----------------------------------------------------------------------------
# Pure-JAX reference (torch-faithful; NCHW convs, torch weight layout).
# ----------------------------------------------------------------------------
def _gelu_ref(x):
    return 0.5 * x * (1.0 + jax.lax.erf(x / jnp.sqrt(2.0).astype(x.dtype)))


def orientation_aware_head_ref(patch_emb, hw_size, p):
    B, L, C = patch_emb.shape
    H = W = hw_size
    hi = jax.lax.Precision.HIGHEST
    dn = ("NCHW", "OIHW", "NCHW")
    feat = jnp.transpose(patch_emb.reshape(B, H, W, C), (0, 3, 1, 2))

    o1 = jax.lax.conv_general_dilated(feat, p["w_or1"], (1, 1), "SAME",
                                      dimension_numbers=dn, precision=hi)
    o1 = _gelu_ref(o1 + p["b_or1"][None, :, None, None])
    o2 = jax.lax.conv_general_dilated(o1, p["w_or2"], (1, 1), "SAME",
                                      dimension_numbers=dn, precision=hi)
    o2 = o2 + p["b_or2"][None, :, None, None]
    cos_sin = o2.reshape(B, 14, 2, H * W)

    hm_logit = jax.lax.conv_general_dilated(feat, p["w_hm"], (1, 1), "SAME",
                                            dimension_numbers=dn, precision=hi)
    hm_logit = hm_logit + p["b_hm"][None, :, None, None]
    heatmaps = jax.nn.softmax(hm_logit.reshape(B, 14, H * W), axis=-1)

    angle_w = jnp.sum(heatmaps[:, :, None, :] * cos_sin, axis=-1)   # [B,14,2]
    angles = jnp.arctan2(angle_w[:, :, 1], angle_w[:, :, 0])
    a, b, c = angles, heatmaps.mean(-1), heatmaps.max(-1)

    concat = jnp.concatenate([a, b, c], axis=-1)
    h = jnp.dot(concat, p["fw1"].T, precision=hi) + p["fb1"]
    h = _gelu_ref(h)
    logits = jnp.dot(h, p["fw2"].T, precision=hi) + p["fb2"]
    wts = jax.nn.softmax(logits, axis=-1)
    return wts[:, 0:1] * a + wts[:, 1:2] * b + wts[:, 2:3] * c


if __name__ == "__main__":
    B = 2            # batch
    C = 32           # feature_dim
    HW_SIZE = 8      # hw_size -> 8x8 patches, L = 64
    NJ = 14

    key = jax.random.PRNGKey(0)
    ks = jax.random.split(key, 11)
    patch_emb = jax.random.normal(ks[0], (B, HW_SIZE * HW_SIZE, C), jnp.float32)

    def uni(k, shape, fan_in):
        bd = 1.0 / math.sqrt(fan_in)
        return jax.random.uniform(k, shape, jnp.float32, -bd, bd)

    params = dict(
        w_or1=uni(ks[1], (256, C, 3, 3), C * 9), b_or1=uni(ks[2], (256,), C * 9),
        w_or2=uni(ks[3], (2 * NJ, 256, 1, 1), 256), b_or2=uni(ks[4], (2 * NJ,), 256),
        w_hm=uni(ks[5], (NJ, C, 3, 3), C * 9), b_hm=uni(ks[6], (NJ,), C * 9),
        fw1=uni(ks[7], (32, 3 * NJ), 3 * NJ), fb1=uni(ks[8], (32,), 3 * NJ),
        fw2=uni(ks[9], (3, 32), 32), fb2=uni(ks[10], (3,), 32),
    )

    out = orientation_aware_head(patch_emb, HW_SIZE, params)
    out = jax.block_until_ready(out)

    ref = orientation_aware_head_ref(patch_emb, HW_SIZE, params)
    assert out.shape == (B, NJ)
    # f32 MXU accumulation order differs from the Precision.HIGHEST reference
    # convs; the in-kernel atan2 polynomial contributes ~1e-7.
    assert jnp.allclose(out, ref, atol=2e-3, rtol=2e-3), "mismatch vs reference"

    print("KERNEL_OK")
</pallas_src>

<mosaic_0001>
module attributes {stable_mosaic.version = 11 : i64} {
  func.func @fused_head_kernel(%arg0: i32, %arg1: memref<1x64x288xf32, #tpu.memory_space<vmem>>, %arg2: memref<288x270xf32, #tpu.memory_space<vmem>>, %arg3: memref<1x270xf32, #tpu.memory_space<vmem>>, %arg4: memref<256x28xf32, #tpu.memory_space<vmem>>, %arg5: memref<1x28xf32, #tpu.memory_space<vmem>>, %arg6: memref<42x32xf32, #tpu.memory_space<vmem>>, %arg7: memref<1x32xf32, #tpu.memory_space<vmem>>, %arg8: memref<32x3xf32, #tpu.memory_space<vmem>>, %arg9: memref<1x3xf32, #tpu.memory_space<vmem>>, %arg10: memref<1x1x14xf32, #tpu.memory_space<vmem>>) attributes {dimension_semantics = [#tpu.dimension_semantics<parallel>], iteration_bounds = array<i64: 2>, scalar_prefetch = 0 : i64, scratch_operands = 0 : i64, tpu.core_type = #tpu.core_type<tc>, window_params = [{transform_indices = @transform_0, window_bounds = array<i64: 1, 64, 288>}, {pipeline_mode = #tpu.pipeline_mode<synchronous>, transform_indices = @transform_1, window_bounds = array<i64: 288, 270>}, {pipeline_mode = #tpu.pipeline_mode<synchronous>, transform_indices = @transform_2, window_bounds = array<i64: 1, 270>}, {pipeline_mode = #tpu.pipeline_mode<synchronous>, transform_indices = @transform_3, window_bounds = array<i64: 256, 28>}, {pipeline_mode = #tpu.pipeline_mode<synchronous>, transform_indices = @transform_4, window_bounds = array<i64: 1, 28>}, {pipeline_mode = #tpu.pipeline_mode<synchronous>, transform_indices = @transform_5, window_bounds = array<i64: 42, 32>}, {pipeline_mode = #tpu.pipeline_mode<synchronous>, transform_indices = @transform_6, window_bounds = array<i64: 1, 32>}, {pipeline_mode = #tpu.pipeline_mode<synchronous>, transform_indices = @transform_7, window_bounds = array<i64: 32, 3>}, {pipeline_mode = #tpu.pipeline_mode<synchronous>, transform_indices = @transform_8, window_bounds = array<i64: 1, 3>}, {transform_indices = @transform_9, window_bounds = array<i64: 1, 1, 14>}]} {
    %c0 = arith.constant 0 : index
    %c0_0 = arith.constant 0 : index
    %c0_1 = arith.constant 0 : index
    %0 = vector.load %arg1[%c0, %c0_0, %c0_1] : memref<1x64x288xf32, #tpu.memory_space<vmem>>, vector<1x64x288xf32>
    %1 = vector.shape_cast %0 : vector<1x64x288xf32> to vector<64x288xf32>
    %c0_2 = arith.constant 0 : index
    %c0_3 = arith.constant 0 : index
    %2 = vector.load %arg2[%c0_2, %c0_3] : memref<288x270xf32, #tpu.memory_space<vmem>>, vector<288x270xf32>
    %cst = arith.constant dense<0.000000e+00> : vector<64x270xf32>
    %3 = tpu.matmul %1, %2, %cst {dimension_numbers = #tpu.dot_dimension_numbers<[1], [0], [0], [1], [0, 0, 1, 1], [], []>} : vector<64x288xf32>, vector<288x270xf32>, vector<64x270xf32> -> vector<64x270xf32>
    %c0_4 = arith.constant 0 : index
    %c0_5 = arith.constant 0 : index
    %4 = vector.load %arg3[%c0_4, %c0_5] : memref<1x270xf32, #tpu.memory_space<vmem>>, vector<1x270xf32>
    %5 = vector.broadcast %4 : vector<1x270xf32> to vector<64x270xf32>
    %6 = arith.addf %3, %5 : vector<64x270xf32>
    %7 = vector.extract_strided_slice %6 {offsets = [0, 0], sizes = [64, 256], strides = [1, 1]} : vector<64x270xf32> to vector<64x256xf32>
    %8 = vector.extract_strided_slice %6 {offsets = [0, 256], sizes = [64, 14], strides = [1, 1]} : vector<64x270xf32> to vector<64x14xf32>
    %cst_6 = arith.constant 5.000000e-01 : f32
    %9 = vector.broadcast %cst_6 : f32 to vector<64x256xf32>
    %10 = arith.mulf %9, %7 : vector<64x256xf32>
    %cst_7 = arith.constant 0.707106769 : f32
    %11 = vector.broadcast %cst_7 : f32 to vector<64x256xf32>
    %12 = arith.mulf %7, %11 : vector<64x256xf32>
    %13 = math.erf %12 : vector<64x256xf32>
    %cst_8 = arith.constant 1.000000e+00 : f32
    %14 = vector.broadcast %cst_8 : f32 to vector<64x256xf32>
    %15 = arith.addf %14, %13 : vector<64x256xf32>
    %16 = arith.mulf %10, %15 : vector<64x256xf32>
    %c0_9 = arith.constant 0 : index
    %c0_10 = arith.constant 0 : index
    %17 = vector.load %arg4[%c0_9, %c0_10] : memref<256x28xf32, #tpu.memory_space<vmem>>, vector<256x28xf32>
    %cst_11 = arith.constant dense<0.000000e+00> : vector<64x28xf32>
    %18 = tpu.matmul %16, %17, %cst_11 {dimension_numbers = #tpu.dot_dimension_numbers<[1], [0], [0], [1], [0, 0, 1, 1], [], []>} : vector<64x256xf32>, vector<256x28xf32>, vector<64x28xf32> -> vector<64x28xf32>
    %c0_12 = arith.constant 0 : index
    %c0_13 = arith.constant 0 : index
    %19 = vector.load %arg5[%c0_12, %c0_13] : memref<1x28xf32, #tpu.memory_space<vmem>>, vector<1x28xf32>
    %20 = vector.broadcast %19 : vector<1x28xf32> to vector<64x28xf32>
    %21 = arith.addf %18, %20 : vector<64x28xf32>
    %cst_14 = arith.constant dense<0xFF800000> : vector<14xf32>
    %22 = vector.multi_reduction <maximumf>, %8, %cst_14 [0] : vector<64x14xf32> to vector<14xf32>
    %23 = vector.shape_cast %22 : vector<14xf32> to vector<1x14xf32>
    %24 = vector.broadcast %23 : vector<1x14xf32> to vector<64x14xf32>
    %25 = arith.subf %8, %24 : vector<64x14xf32>
    %26 = math.exp %25 : vector<64x14xf32>
    %cst_15 = arith.constant dense<0.000000e+00> : vector<14xf32>
    %27 = vector.multi_reduction <add>, %26, %cst_15 [0] : vector<64x14xf32> to vector<14xf32>
    %28 = vector.shape_cast %27 : vector<14xf32> to vector<1x14xf32>
    %cst_16 = arith.constant 1.000000e+00 : f32
    %29 = vector.broadcast %cst_16 : f32 to vector<1x14xf32>
    %30 = arith.divf %29, %28 : vector<1x14xf32>
    %31 = vector.broadcast %30 : vector<1x14xf32> to vector<64x14xf32>
    %32 = arith.mulf %26, %31 : vector<64x14xf32>
    %33 = vector.extract_strided_slice %21 {offsets = [0, 0], sizes = [64, 14], strides = [1, 1]} : vector<64x28xf32> to vector<64x14xf32>
    %34 = vector.extract_strided_slice %21 {offsets = [0, 14], sizes = [64, 14], strides = [1, 1]} : vector<64x28xf32> to vector<64x14xf32>
    %35 = arith.mulf %32, %33 : vector<64x14xf32>
    %cst_17 = arith.constant dense<0.000000e+00> : vector<14xf32>
    %36 = vector.multi_reduction <add>, %35, %cst_17 [0] : vector<64x14xf32> to vector<14xf32>
    %37 = vector.shape_cast %36 : vector<14xf32> to vector<1x14xf32>
    %38 = arith.mulf %32, %34 : vector<64x14xf32>
    %cst_18 = arith.constant dense<0.000000e+00> : vector<14xf32>
    %39 = vector.multi_reduction <add>, %38, %cst_18 [0] : vector<64x14xf32> to vector<14xf32>
    %40 = vector.shape_cast %39 : vector<14xf32> to vector<1x14xf32>
    %cst_19 = arith.constant dense<0.000000e+00> : vector<14xf32>
    %41 = vector.multi_reduction <add>, %32, %cst_19 [0] : vector<64x14xf32> to vector<14xf32>
    %42 = vector.shape_cast %41 : vector<14xf32> to vector<1x14xf32>
    %cst_20 = arith.constant 1.562500e-02 : f32
    %43 = vector.broadcast %cst_20 : f32 to vector<1x14xf32>
    %44 = arith.mulf %42, %43 : vector<1x14xf32>
    %cst_21 = arith.constant dense<0xFF800000> : vector<14xf32>
    %45 = vector.multi_reduction <maximumf>, %32, %cst_21 [0] : vector<64x14xf32> to vector<14xf32>
    %46 = vector.shape_cast %45 : vector<14xf32> to vector<1x14xf32>
    %47 = math.absf %37 : vector<1x14xf32>
    %48 = math.absf %40 : vector<1x14xf32>
    %49 = arith.cmpf ogt, %48, %47 : vector<1x14xf32>
    %50 = arith.select %49, %47, %48 : vector<1x14xi1>, vector<1x14xf32>
    %51 = arith.select %49, %48, %47 : vector<1x14xi1>, vector<1x14xf32>
    %cst_22 = arith.constant 1.000000e-30 : f32
    %52 = vector.broadcast %cst_22 : f32 to vector<1x14xf32>
    %53 = arith.maximumf %51, %52 : vector<1x14xf32>
    %54 = arith.divf %50, %53 : vector<1x14xf32>
    %cst_23 = arith.constant 0.414213568 : f32
    %55 = vector.broadcast %cst_23 : f32 to vector<1x14xf32>
    %56 = arith.cmpf ogt, %54, %55 : vector<1x14xf32>
    %cst_24 = arith.constant 1.000000e+00 : f32
    %57 = vector.broadcast %cst_24 : f32 to vector<1x14xf32>
    %58 = arith.subf %54, %57 : vector<1x14xf32>
    %cst_25 = arith.constant 1.000000e+00 : f32
    %59 = vector.broadcast %cst_25 : f32 to vector<1x14xf32>
    %60 = arith.addf %54, %59 : vector<1x14xf32>
    %61 = arith.divf %58, %60 : vector<1x14xf32>
    %62 = arith.select %56, %61, %54 : vector<1x14xi1>, vector<1x14xf32>
    %63 = arith.mulf %62, %62 : vector<1x14xf32>
    %cst_26 = arith.constant 0.0805374458 : f32
    %64 = vector.broadcast %cst_26 : f32 to vector<1x14xf32>
    %65 = arith.mulf %64, %63 : vector<1x14xf32>
    %cst_27 = arith.constant 0.138776854 : f32
    %66 = vector.broadcast %cst_27 : f32 to vector<1x14xf32>
    %67 = arith.subf %65, %66 : vector<1x14xf32>
    %68 = arith.mulf %67, %63 : vector<1x14xf32>
    %cst_28 = arith.constant 0.199777111 : f32
    %69 = vector.broadcast %cst_28 : f32 to vector<1x14xf32>
    %70 = arith.addf %68, %69 : vector<1x14xf32>
    %71 = arith.mulf %70, %63 : vector<1x14xf32>
    %cst_29 = arith.constant 0.333329499 : f32
    %72 = vector.broadcast %cst_29 : f32 to vector<1x14xf32>
    %73 = arith.subf %71, %72 : vector<1x14xf32>
    %74 = arith.mulf %73, %63 : vector<1x14xf32>
    %75 = arith.mulf %74, %62 : vector<1x14xf32>
    %76 = arith.addf %75, %62 : vector<1x14xf32>
    %cst_30 = arith.constant 0.785398185 : f32
    %77 = vector.broadcast %cst_30 : f32 to vector<1x14xf32>
    %78 = arith.addf %77, %76 : vector<1x14xf32>
    %79 = arith.select %56, %78, %76 : vector<1x14xi1>, vector<1x14xf32>
    %cst_31 = arith.constant 1.57079637 : f32
    %80 = vector.broadcast %cst_31 : f32 to vector<1x14xf32>
    %81 = arith.subf %80, %79 : vector<1x14xf32>
    %82 = arith.select %49, %81, %79 : vector<1x14xi1>, vector<1x14xf32>
    %cst_32 = arith.constant 0.000000e+00 : f32
    %83 = vector.broadcast %cst_32 : f32 to vector<1x14xf32>
    %84 = arith.cmpf olt, %37, %83 : vector<1x14xf32>
    %cst_33 = arith.constant 3.14159274 : f32
    %85 = vector.broadcast %cst_33 : f32 to vector<1x14xf32>
    %86 = arith.subf %85, %82 : vector<1x14xf32>
    %87 = arith.select %84, %86, %82 : vector<1x14xi1>, vector<1x14xf32>
    %cst_34 = arith.constant 0.000000e+00 : f32
    %88 = vector.broadcast %cst_34 : f32 to vector<1x14xf32>
    %89 = arith.cmpf olt, %40, %88 : vector<1x14xf32>
    %cst_35 = arith.constant 0.000000e+00 : f32
    %90 = vector.broadcast %cst_35 : f32 to vector<1x14xf32>
    %91 = arith.subf %90, %87 : vector<1x14xf32>
    %92 = arith.select %89, %91, %87 : vector<1x14xi1>, vector<1x14xf32>
    %c0_36 = arith.constant 0 : index
    %c0_37 = arith.constant 0 : index
    %93 = vector.load %arg6[%c0_36, %c0_37] : memref<42x32xf32, #tpu.memory_space<vmem>>, vector<14x32xf32>
    %cst_38 = arith.constant dense<0.000000e+00> : vector<1x32xf32>
    %94 = tpu.matmul %92, %93, %cst_38 {dimension_numbers = #tpu.dot_dimension_numbers<[1], [0], [0], [1], [0, 0, 1, 1], [], []>} : vector<1x14xf32>, vector<14x32xf32>, vector<1x32xf32> -> vector<1x32xf32>
    %c14 = arith.constant 14 : index
    %c0_39 = arith.constant 0 : index
    %95 = vector.load %arg6[%c14, %c0_39] : memref<42x32xf32, #tpu.memory_space<vmem>>, vector<14x32xf32>
    %cst_40 = arith.constant dense<0.000000e+00> : vector<1x32xf32>
    %96 = tpu.matmul %44, %95, %cst_40 {dimension_numbers = #tpu.dot_dimension_numbers<[1], [0], [0], [1], [0, 0, 1, 1], [], []>} : vector<1x14xf32>, vector<14x32xf32>, vector<1x32xf32> -> vector<1x32xf32>
    %97 = arith.addf %94, %96 : vector<1x32xf32>
    %c28 = arith.constant 28 : index
    %c0_41 = arith.constant 0 : index
    %98 = vector.load %arg6[%c28, %c0_41] : memref<42x32xf32, #tpu.memory_space<vmem>>, vector<14x32xf32>
    %cst_42 = arith.constant dense<0.000000e+00> : vector<1x32xf32>
    %99 = tpu.matmul %46, %98, %cst_42 {dimension_numbers = #tpu.dot_dimension_numbers<[1], [0], [0], [1], [0, 0, 1, 1], [], []>} : vector<1x14xf32>, vector<14x32xf32>, vector<1x32xf32> -> vector<1x32xf32>
    %100 = arith.addf %97, %99 : vector<1x32xf32>
    %c0_43 = arith.constant 0 : index
    %c0_44 = arith.constant 0 : index
    %101 = vector.load %arg7[%c0_43, %c0_44] : memref<1x32xf32, #tpu.memory_space<vmem>>, vector<1x32xf32>
    %102 = arith.addf %100, %101 : vector<1x32xf32>
    %cst_45 = arith.constant 5.000000e-01 : f32
    %103 = vector.broadcast %cst_45 : f32 to vector<1x32xf32>
    %104 = arith.mulf %103, %102 : vector<1x32xf32>
    %cst_46 = arith.constant 0.707106769 : f32
    %105 = vector.broadcast %cst_46 : f32 to vector<1x32xf32>
    %106 = arith.mulf %102, %105 : vector<1x32xf32>
    %107 = math.erf %106 : vector<1x32xf32>
    %cst_47 = arith.constant 1.000000e+00 : f32
    %108 = vector.broadcast %cst_47 : f32 to vector<1x32xf32>
    %109 = arith.addf %108, %107 : vector<1x32xf32>
    %110 = arith.mulf %104, %109 : vector<1x32xf32>
    %c0_48 = arith.constant 0 : index
    %c0_49 = arith.constant 0 : index
    %111 = vector.load %arg8[%c0_48, %c0_49] : memref<32x3xf32, #tpu.memory_space<vmem>>, vector<32x3xf32>
    %cst_50 = arith.constant dense<0.000000e+00> : vector<1x3xf32>
    %112 = tpu.matmul %110, %111, %cst_50 {dimension_numbers = #tpu.dot_dimension_numbers<[1], [0], [0], [1], [0, 0, 1, 1], [], []>} : vector<1x32xf32>, vector<32x3xf32>, vector<1x3xf32> -> vector<1x3xf32>
    %c0_51 = arith.constant 0 : index
    %c0_52 = arith.constant 0 : index
    %113 = vector.load %arg9[%c0_51, %c0_52] : memref<1x3xf32, #tpu.memory_space<vmem>>, vector<1x3xf32>
    %114 = arith.addf %112, %113 : vector<1x3xf32>
    %cst_53 = arith.constant dense<0xFF800000> : vector<1xf32>
    %115 = vector.multi_reduction <maximumf>, %114, %cst_53 [1] : vector<1x3xf32> to vector<1xf32>
    %116 = vector.shape_cast %115 : vector<1xf32> to vector<1x1xf32>
    %117 = vector.broadcast %116 : vector<1x1xf32> to vector<1x3xf32>
    %118 = arith.subf %114, %117 : vector<1x3xf32>
    %119 = math.exp %118 : vector<1x3xf32>
    %cst_54 = arith.constant dense<0.000000e+00> : vector<1xf32>
    %120 = vector.multi_reduction <add>, %119, %cst_54 [1] : vector<1x3xf32> to vector<1xf32>
    %121 = vector.shape_cast %120 : vector<1xf32> to vector<1x1xf32>
    %122 = vector.broadcast %121 : vector<1x1xf32> to vector<1x3xf32>
    %123 = arith.divf %119, %122 : vector<1x3xf32>
    %124 = vector.extract_strided_slice %123 {offsets = [0, 0], sizes = [1, 1], strides = [1, 1]} : vector<1x3xf32> to vector<1x1xf32>
    %125 = vector.broadcast %124 : vector<1x1xf32> to vector<1x14xf32>
    %126 = arith.mulf %125, %92 : vector<1x14xf32>
    %127 = vector.extract_strided_slice %123 {offsets = [0, 1], sizes = [1, 1], strides = [1, 1]} : vector<1x3xf32> to vector<1x1xf32>
    %128 = vector.broadcast %127 : vector<1x1xf32> to vector<1x14xf32>
    %129 = arith.mulf %128, %44 : vector<1x14xf32>
    %130 = arith.addf %126, %129 : vector<1x14xf32>
    %131 = vector.extract_strided_slice %123 {offsets = [0, 2], sizes = [1, 1], strides = [1, 1]} : vector<1x3xf32> to vector<1x1xf32>
    %132 = vector.broadcast %131 : vector<1x1xf32> to vector<1x14xf32>
    %133 = arith.mulf %132, %46 : vector<1x14xf32>
    %134 = arith.addf %130, %133 : vector<1x14xf32>
    %135 = vector.shape_cast %134 : vector<1x14xf32> to vector<1x1x14xf32>
    %c0_55 = arith.constant 0 : index
    %c0_56 = arith.constant 0 : index
    %c0_57 = arith.constant 0 : index
    %136 = vector.load %arg10[%c0_55, %c0_56, %c0_57] : memref<1x1x14xf32, #tpu.memory_space<vmem>>, vector<1x1x14xf32>
    tpu.vector_store %arg10[%c0_55, %c0_56, %c0_57], %135 {strides = array<i32>} : memref<1x1x14xf32, #tpu.memory_space<vmem>>, vector<1x1x14xf32>,
    return
  }
  func.func @transform_0(%arg0: i32) -> (i32, i32, i32) {
    %c0_i32 = arith.constant 0 : i32
    %c0_i32_0 = arith.constant 0 : i32
    %c0_i32_1 = arith.constant 0 : i32
    return %arg0, %c0_i32, %c0_i32_0 : i32, i32, i32
  }
  func.func @transform_1(%arg0: i32) -> (i32, i32) {
    %c0_i32 = arith.constant 0 : i32
    %c0_i32_0 = arith.constant 0 : i32
    %c0_i32_1 = arith.constant 0 : i32
    return %c0_i32, %c0_i32_0 : i32, i32
  }
  func.func @transform_2(%arg0: i32) -> (i32, i32) {
    %c0_i32 = arith.constant 0 : i32
    %c0_i32_0 = arith.constant 0 : i32
    %c0_i32_1 = arith.constant 0 : i32
    return %c0_i32, %c0_i32_0 : i32, i32
  }
  func.func @transform_3(%arg0: i32) -> (i32, i32) {
    %c0_i32 = arith.constant 0 : i32
    %c0_i32_0 = arith.constant 0 : i32
    %c0_i32_1 = arith.constant 0 : i32
    return %c0_i32, %c0_i32_0 : i32, i32
  }
  func.func @transform_4(%arg0: i32) -> (i32, i32) {
    %c0_i32 = arith.constant 0 : i32
    %c0_i32_0 = arith.constant 0 : i32
    %c0_i32_1 = arith.constant 0 : i32
    return %c0_i32, %c0_i32_0 : i32, i32
  }
  func.func @transform_5(%arg0: i32) -> (i32, i32) {
    %c0_i32 = arith.constant 0 : i32
    %c0_i32_0 = arith.constant 0 : i32
    %c0_i32_1 = arith.constant 0 : i32
    return %c0_i32, %c0_i32_0 : i32, i32
  }
  func.func @transform_6(%arg0: i32) -> (i32, i32) {
    %c0_i32 = arith.constant 0 : i32
    %c0_i32_0 = arith.constant 0 : i32
    %c0_i32_1 = arith.constant 0 : i32
    return %c0_i32, %c0_i32_0 : i32, i32
  }
  func.func @transform_7(%arg0: i32) -> (i32, i32) {
    %c0_i32 = arith.constant 0 : i32
    %c0_i32_0 = arith.constant 0 : i32
    %c0_i32_1 = arith.constant 0 : i32
    return %c0_i32, %c0_i32_0 : i32, i32
  }
  func.func @transform_8(%arg0: i32) -> (i32, i32) {
    %c0_i32 = arith.constant 0 : i32
    %c0_i32_0 = arith.constant 0 : i32
    %c0_i32_1 = arith.constant 0 : i32
    return %c0_i32, %c0_i32_0 : i32, i32
  }
  func.func @transform_9(%arg0: i32) -> (i32, i32, i32) {
    %c0_i32 = arith.constant 0 : i32
    %c0_i32_0 = arith.constant 0 : i32
    %c0_i32_1 = arith.constant 0 : i32
    return %arg0, %c0_i32, %c0_i32_0 : i32, i32, i32
  }
}

</mosaic_0001>

<llo_original>
// kernel: tpu_custom_call.1
$region0: #{tpu_custom_call.1}
  #allocation0 [shape = 'u32[]', space=smem, size = 0x4, offset = 0x4, fixed_abs, tag = 'smem constant byte address 0x4 - core index']
  #allocation1 [shape = 'u32[144,128]{1,0:T(1,128)}', space=vmem, size = 0x12000, scoped, tag = 'internal scratch']
  %s0 = inlined_call_operand.vmem [shape: f32[2,64,288], index: 0, kind: input, shape index: {}]
  %s1 = inlined_call_operand.vmem [shape: f32[288,270], index: 1, kind: input, shape index: {}]
  %s2 = inlined_call_operand.vmem [shape: f32[1,270], index: 2, kind: input, shape index: {}]
  %s3 = inlined_call_operand.vmem [shape: f32[256,28], index: 3, kind: input, shape index: {}]
  %s4 = inlined_call_operand.vmem [shape: f32[1,28], index: 4, kind: input, shape index: {}]
  %s5 = inlined_call_operand.vmem [shape: f32[42,32], index: 5, kind: input, shape index: {}]
  %s6 = inlined_call_operand.vmem [shape: f32[1,32], index: 6, kind: input, shape index: {}]
  %s7 = inlined_call_operand.vmem [shape: f32[32,3], index: 7, kind: input, shape index: {}]
  %s8 = inlined_call_operand.vmem [shape: f32[1,3], index: 8, kind: input, shape index: {}]
  %s9 = inlined_call_operand.hbm [shape: f32[2,1,14], index: 9, kind: output, shape index: {}]
  %s10 = sld [smem:[#allocation0]]
  $region69: #{tpu_custom_call.1} parent=0
    _
  %s12 = ssub.s32 1, %s10
  %s13 = scalar_select 0, %s12, %s10
  $region1: #{tpu_custom_call.1} parent=0
    #allocation2 [shape = 'u8[1024]{0}', space=vmem, size = 0x400, scoped, tag = 'output window, operand 0']
    #allocation3 [shape = 's32[2]{0}', space=sflag, size = 0x8, scoped, tag = 'scoped memory for tpu_custom_call.1']
    %14 = vsyncpa [#allocation3], 0
    %s15 = scalar_lea.sflag [#allocation3], 1
    %16 = vsyncpa %s15, 0
    loop: start=0, step=1, limit=4
    $region2: #{tpu_custom_call.1} parent=1 // loop_pre_header
      _
    $region3: #{tpu_custom_call.1} parent=1 // loop_header
      %s18 = sphi 0, %s22
      %p19 = scmp.ge.s32.totalorder %s18, 4
      %s28 = sphi 0, %s30
      %s31 = sphi 0, %s28
      %s32 = sphi 0, %s31
      %s48 = sphi 0, %s32
      %s52 = sphi 0, %s52
      %s54 = sphi 0, %s52
      %s55 = sphi 0, %s54
      %s69 = sphi 0, %s55
      %s73 = sphi 0, %s73
      %s75 = sphi 0, %s73
      %s76 = sphi 0, %s75
      %s90 = sphi 0, %s76
      %s94 = sphi 0, %s94
      %s96 = sphi 0, %s94
      %s97 = sphi 0, %s96
      %s111 = sphi 0, %s97
      %s115 = sphi 0, %s115
      %s117 = sphi 0, %s115
      %s118 = sphi 0, %s117
      %s132 = sphi 0, %s118
      %s136 = sphi 0, %s136
      %s138 = sphi 0, %s136
      %s139 = sphi 0, %s138
      %s153 = sphi 0, %s139
      %s157 = sphi 0, %s157
      %s159 = sphi 0, %s157
      %s160 = sphi 0, %s159
      %s174 = sphi 0, %s160
      %s178 = sphi 0, %s178
      %s180 = sphi 0, %s178
      %s181 = sphi 0, %s180
      %s195 = sphi 0, %s181
      %s199 = sphi 0, %s199
      %s201 = sphi 0, %s199
      %s202 = sphi 0, %s201
      %s216 = sphi 0, %s202
      %s222 = sphi 0, %s224
      %s225 = sphi 0, %s222
      %s226 = sphi 0, %s225
      %s242 = sphi 0, %s226
    $region4: #{tpu_custom_call.1} parent=1 // loop_header_branch
      %21 = sbr.rel (%p19) target = $region8
    $region5: #{tpu_custom_call.1} parent=1 // loop_body
      %s23 = ssub.s32 %s18, 1
      %s24 = ssub.s32 %s18, 2
      %s25 = sadd.s32 %s18, 1
      %s26 = ssub.s32 %s18, %s25
      %p27 = scmp.eq.s32.totalorder %s26, 0
      %s29 = sadd.s32 %s28, 1
      %s30 = scalar_select %p27, %s28, %s29
      %p33 = pneg %p27
      %p34 = scmp.eq.s32.totalorder %s18, 1
      %p35 = por %p33, %p34
      %p36 = scmp.ne.s32.totalorder %s28, %s31
      %p37 = scmp.eq.s32.totalorder %s18, 0
      %p38 = por %p36, %p37
      %p39 = scmp.ne.s32.totalorder %s28, %s31
      %p40 = scmp.eq.s32.totalorder %s23, 1
      %p41 = por %p39, %p40
      %p42 = scmp.ne.s32.totalorder %s31, %s32
      %p43 = scmp.eq.s32.totalorder %s23, 0
      %p44 = por %p42, %p43
      %p45 = scmp.ne.s32.totalorder %s31, %s32
      %p46 = scmp.eq.s32.totalorder %s24, 1
      %p47 = por %p45, %p46
      %p49 = scmp.ne.s32.totalorder %s32, %s48
      %p50 = scmp.eq.s32.totalorder %s24, 0
      %p51 = por %p49, %p50
      %s53 = sadd.s32 %s52, 1
      %p56 = scmp.eq.s32.totalorder %s18, 1
      %p57 = scmp.ne.s32.totalorder %s52, %s54
      %p58 = scmp.eq.s32.totalorder %s18, 0
      %p59 = por %p57, %p58
      %p60 = scmp.ne.s32.totalorder %s52, %s54
      %p61 = scmp.eq.s32.totalorder %s23, 1
      %p62 = por %p60, %p61
      %p63 = scmp.ne.s32.totalorder %s54, %s55
      %p64 = scmp.eq.s32.totalorder %s23, 0
      %p65 = por %p63, %p64
      %p66 = scmp.ne.s32.totalorder %s54, %s55
      %p67 = scmp.eq.s32.totalorder %s24, 1
      %p68 = por %p66, %p67
      %p70 = scmp.ne.s32.totalorder %s55, %s69
      %p71 = scmp.eq.s32.totalorder %s24, 0
      %p72 = por %p70, %p71
      %s74 = sadd.s32 %s73, 1
      %p77 = scmp.eq.s32.totalorder %s18, 1
      %p78 = scmp.ne.s32.totalorder %s73, %s75
      %p79 = scmp.eq.s32.totalorder %s18, 0
      %p80 = por %p78, %p79
      %p81 = scmp.ne.s32.totalorder %s73, %s75
      %p82 = scmp.eq.s32.totalorder %s23, 1
      %p83 = por %p81, %p82
      %p84 = scmp.ne.s32.totalorder %s75, %s76
      %p85 = scmp.eq.s32.totalorder %s23, 0
      %p86 = por %p84, %p85
      %p87 = scmp.ne.s32.totalorder %s75, %s76
      %p88 = scmp.eq.s32.totalorder %s24, 1
      %p89 = por %p87, %p88
      %p91 = scmp.ne.s32.totalorder %s76, %s90
      %p92 = scmp.eq.s32.totalorder %s24, 0
      %p93 = por %p91, %p92
      %s95 = sadd.s32 %s94, 1
      %p98 = scmp.eq.s32.totalorder %s18, 1
      %p99 = scmp.ne.s32.totalorder %s94, %s96
      %p100 = scmp.eq.s32.totalorder %s18, 0
      %p101 = por %p99, %p100
      %p102 = scmp.ne.s32.totalorder %s94, %s96
      %p103 = scmp.eq.s32.totalorder %s23, 1
      %p104 = por %p102, %p103
      %p105 = scmp.ne.s32.totalorder %s96, %s97
      %p106 = scmp.eq.s32.totalorder %s23, 0
      %p107 = por %p105, %p106
      %p108 = scmp.ne.s32.totalorder %s96, %s97
      %p109 = scmp.eq.s32.totalorder %s24, 1
      %p110 = por %p108, %p109
      %p112 = scmp.ne.s32.totalorder %s97, %s111
      %p113 = scmp.eq.s32.totalorder %s24, 0
      %p114 = por %p112, %p113
      %s116 = sadd.s32 %s115, 1
      %p119 = scmp.eq.s32.totalorder %s18, 1
      %p120 = scmp.ne.s32.totalorder %s115, %s117
      %p121 = scmp.eq.s32.totalorder %s18, 0
      %p122 = por %p120, %p121
      %p123 = scmp.ne.s32.totalorder %s115, %s117
      %p124 = scmp.eq.s32.totalorder %s23, 1
      %p125 = por %p123, %p124
      %p126 = scmp.ne.s32.totalorder %s117, %s118
      %p127 = scmp.eq.s32.totalorder %s23, 0
      %p128 = por %p126, %p127
      %p129 = scmp.ne.s32.totalorder %s117, %s118
      %p130 = scmp.eq.s32.totalorder %s24, 1
      %p131 = por %p129, %p130
      %p133 = scmp.ne.s32.totalorder %s118, %s132
      %p134 = scmp.eq.s32.totalorder %s24, 0
      %p135 = por %p133, %p134
      %s137 = sadd.s32 %s136, 1
      %p140 = scmp.eq.s32.totalorder %s18, 1
      %p141 = scmp.ne.s32.totalorder %s136, %s138
      %p142 = scmp.eq.s32.totalorder %s18, 0
      %p143 = por %p141, %p142
      %p144 = scmp.ne.s32.totalorder %s136, %s138
      %p145 = scmp.eq.s32.totalorder %s23, 1
      %p146 = por %p144, %p145
      %p147 = scmp.ne.s32.totalorder %s138, %s139
      %p148 = scmp.eq.s32.totalorder %s23, 0
      %p149 = por %p147, %p148
      %p150 = scmp.ne.s32.totalorder %s138, %s139
      %p151 = scmp.eq.s32.totalorder %s24, 1
      %p152 = por %p150, %p151
      %p154 = scmp.ne.s32.totalorder %s139, %s153
      %p155 = scmp.eq.s32.totalorder %s24, 0
      %p156 = por %p154, %p155
      %s158 = sadd.s32 %s157, 1
      %p161 = scmp.eq.s32.totalorder %s18, 1
      %p162 = scmp.ne.s32.totalorder %s157, %s159
      %p163 = scmp.eq.s32.totalorder %s18, 0
      %p164 = por %p162, %p163
      %p165 = scmp.ne.s32.totalorder %s157, %s159
      %p166 = scmp.eq.s32.totalorder %s23, 1
      %p167 = por %p165, %p166
      %p168 = scmp.ne.s32.totalorder %s159, %s160
      %p169 = scmp.eq.s32.totalorder %s23, 0
      %p170 = por %p168, %p169
      %p171 = scmp.ne.s32.totalorder %s159, %s160
      %p172 = scmp.eq.s32.totalorder %s24, 1
      %p173 = por %p171, %p172
      %p175 = scmp.ne.s32.totalorder %s160, %s174
      %p176 = scmp.eq.s32.totalorder %s24, 0
      %p177 = por %p175, %p176
      %s179 = sadd.s32 %s178, 1
      %p182 = scmp.eq.s32.totalorder %s18, 1
      %p183 = scmp.ne.s32.totalorder %s178, %s180
      %p184 = scmp.eq.s32.totalorder %s18, 0
      %p185 = por %p183, %p184
      %p186 = scmp.ne.s32.totalorder %s178, %s180
      %p187 = scmp.eq.s32.totalorder %s23, 1
      %p188 = por %p186, %p187
      %p189 = scmp.ne.s32.totalorder %s180, %s181
      %p190 = scmp.eq.s32.totalorder %s23, 0
      %p191 = por %p189, %p190
      %p192 = scmp.ne.s32.totalorder %s180, %s181
      %p193 = scmp.eq.s32.totalorder %s24, 1
      %p194 = por %p192, %p193
      %p196 = scmp.ne.s32.totalorder %s181, %s195
      %p197 = scmp.eq.s32.totalorder %s24, 0
      %p198 = por %p196, %p197
      %s200 = sadd.s32 %s199, 1
      %p203 = scmp.eq.s32.totalorder %s18, 1
      %p204 = scmp.ne.s32.totalorder %s199, %s201
      %p205 = scmp.eq.s32.totalorder %s18, 0
      %p206 = por %p204, %p205
      %p207 = scmp.ne.s32.totalorder %s199, %s201
      %p208 = scmp.eq.s32.totalorder %s23, 1
      %p209 = por %p207, %p208
      %p210 = scmp.ne.s32.totalorder %s201, %s202
      %p211 = scmp.eq.s32.totalorder %s23, 0
      %p212 = por %p210, %p211
      %p213 = scmp.ne.s32.totalorder %s201, %s202
      %p214 = scmp.eq.s32.totalorder %s24, 1
      %p215 = por %p213, %p214
      %p217 = scmp.ne.s32.totalorder %s202, %s216
      %p218 = scmp.eq.s32.totalorder %s24, 0
      %p219 = por %p217, %p218
      %s220 = ssub.s32 %s18, %s25
      %p221 = scmp.eq.s32.totalorder %s220, 0
      %s223 = sadd.s32 %s222, 1
      %s224 = scalar_select %p221, %s222, %s223
      %p227 = pneg %p221
      %p228 = scmp.eq.s32.totalorder %s18, 1
      %p229 = por %p227, %p228
      %p230 = scmp.ne.s32.totalorder %s222, %s225
      %p231 = scmp.eq.s32.totalorder %s18, 0
      %p232 = por %p230, %p231
      %p233 = scmp.ne.s32.totalorder %s222, %s225
      %p234 = scmp.eq.s32.totalorder %s23, 1
      %p235 = por %p233, %p234
      %p236 = scmp.ne.s32.totalorder %s225, %s226
      %p237 = scmp.eq.s32.totalorder %s23, 0
      %p238 = por %p236, %p237
      %p239 = scmp.ne.s32.totalorder %s225, %s226
      %p240 = scmp.eq.s32.totalorder %s24, 1
      %p241 = por %p239, %p240
      %p243 = scmp.ne.s32.totalorder %s226, %s242
      %p244 = scmp.eq.s32.totalorder %s24, 0
      %p245 = por %p243, %p244
      %p246 = scmp.le.s32.totalorder 1, %s18
      %p247 = scmp.lt.s32.totalorder %s18, 3
      %p248 = pnand %p246, %p247
      %p249 = pneg %p248
      // Predicated region
      $region9: #{tpu_custom_call.1} parent=5 // pred_check
        _
      $region10: #{tpu_custom_call.1} parent=5 // pred_check_branch
        %251 = sbr.rel (%p248) target = $region12
      $region11: #{tpu_custom_call.1} parent=5 // pred_region
        %s252 = ssub.s32 %s18, 1
        // Predicated region
        $region13: #{tpu_custom_call.1} parent=11 // pred_check
          %p253 = pneg %p65
        $region14: #{tpu_custom_call.1} parent=11 // pred_check_branch
          %255 = sbr.rel (%p253) target = $region16
        $region15: #{tpu_custom_call.1} parent=11 // pred_region
          _
        $region16: #{tpu_custom_call.1} parent=11 // pred_fallthru
          _
        // Predicated region
        $region17: #{tpu_custom_call.1} parent=11 // pred_check
          %p256 = pneg %p86
        $region18: #{tpu_custom_call.1} parent=11 // pred_check_branch
          %258 = sbr.rel (%p256) target = $region20
        $region19: #{tpu_custom_call.1} parent=11 // pred_region
          _
        $region20: #{tpu_custom_call.1} parent=11 // pred_fallthru
          _
        // Predicated region
        $region21: #{tpu_custom_call.1} parent=11 // pred_check
          %p259 = pneg %p107
        $region22: #{tpu_custom_call.1} parent=11 // pred_check_branch
          %261 = sbr.rel (%p259) target = $region24
        $region23: #{tpu_custom_call.1} parent=11 // pred_region
          _
        $region24: #{tpu_custom_call.1} parent=11 // pred_fallthru
          _
        // Predicated region
        $region25: #{tpu_custom_call.1} parent=11 // pred_check
          %p262 = pneg %p128
        $region26: #{tpu_custom_call.1} parent=11 // pred_check_branch
          %264 = sbr.rel (%p262) target = $region28
        $region27: #{tpu_custom_call.1} parent=11 // pred_region
          _
        $region28: #{tpu_custom_call.1} parent=11 // pred_fallthru
          _
        // Predicated region
        $region29: #{tpu_custom_call.1} parent=11 // pred_check
          %p265 = pneg %p149
        $region30: #{tpu_custom_call.1} parent=11 // pred_check_branch
          %267 = sbr.rel (%p265) target = $region32
        $region31: #{tpu_custom_call.1} parent=11 // pred_region
          _
        $region32: #{tpu_custom_call.1} parent=11 // pred_fallthru
          _
        // Predicated region
        $region33: #{tpu_custom_call.1} parent=11 // pred_check
          %p268 = pneg %p170
        $region34: #{tpu_custom_call.1} parent=11 // pred_check_branch
          %270 = sbr.rel (%p268) target = $region36
        $region35: #{tpu_custom_call.1} parent=11 // pred_region
          _
        $region36: #{tpu_custom_call.1} parent=11 // pred_fallthru
          _
        // Predicated region
        $region37: #{tpu_custom_call.1} parent=11 // pred_check
          %p271 = pneg %p191
        $region38: #{tpu_custom_call.1} parent=11 // pred_check_branch
          %273 = sbr.rel (%p271) target = $region40
        $region39: #{tpu_custom_call.1} parent=11 // pred_region
          _
        $region40: #{tpu_custom_call.1} parent=11 // pred_fallthru
          _
        // Predicated region
        $region41: #{tpu_custom_call.1} parent=11 // pred_check
          %p274 = pneg %p212
        $region42: #{tpu_custom_call.1} parent=11 // pred_check_branch
          %276 = sbr.rel (%p274) target = $region44
        $region43: #{tpu_custom_call.1} parent=11 // pred_region
          _
        $region44: #{tpu_custom_call.1} parent=11 // pred_fallthru
          _
      $region12: #{tpu_custom_call.1} parent=5 // pred_fallthru
        _
      %p277 = scmp.lt.s32.totalorder %s18, 2
      // Predicated region
      $region45: #{tpu_custom_call.1} parent=5 // pred_check
        %p278 = pneg %p277
      $region46: #{tpu_custom_call.1} parent=5 // pred_check_branch
        %280 = sbr.rel (%p278) target = $region48
      $region47: #{tpu_custom_call.1} parent=5 // pred_region
        // Predicated region
        $region49: #{tpu_custom_call.1} parent=47 // pred_check
          %p281 = pneg %p38
        $region50: #{tpu_custom_call.1} parent=47 // pred_check_branch
          %283 = sbr.rel (%p281) target = $region52
        $region51: #{tpu_custom_call.1} parent=47 // pred_region
          %p284 = scmp.lt.s32.totalorder %s18, 1
          %s285 = scalar_select %p284, %s18, 1
          %s286 = smul.addr %s285, 24
          %s287 = smul.addr %s286, 8
          %s288 = scalar_lea.vmem %s0, %s287
        $region52: #{tpu_custom_call.1} parent=47 // pred_fallthru
          _
      $region48: #{tpu_custom_call.1} parent=5 // pred_fallthru
        _
      %p289 = scmp.le.s32.totalorder 1, %s18
      %p290 = scmp.lt.s32.totalorder %s18, 3
      %p291 = pnand %p289, %p290
      %p292 = pneg %p291
      // Predicated region
      $region53: #{tpu_custom_call.1} parent=5 // pred_check
        _
      $region54: #{tpu_custom_call.1} parent=5 // pred_check_branch
        %294 = sbr.rel (%p291) target = $region56
      $region55: #{tpu_custom_call.1} parent=5 // pred_region
        %s295 = ssub.s32 %s18, 1
        %p296 = scmp.lt.s32.totalorder %s23, 1
        %s297 = scalar_select %p296, %s23, 1
        %s298 = smul.addr %s297, 24
        %s299 = smul.addr %s298, 8
        %s300 = scalar_lea.vmem %s0, %s299
        %p301 = pneg %p44
        %p302 = pneg %p41
        %p303 = pneg %p65
        %p304 = pneg %p62
        %p305 = pneg %p86
        %p306 = pneg %p83
        %p307 = pneg %p107
        %p308 = pneg %p104
        %p309 = pneg %p128
        %p310 = pneg %p125
        %p311 = pneg %p149
        %p312 = pneg %p146
        %p313 = pneg %p170
        %p314 = pneg %p167
        %p315 = pneg %p191
        %p316 = pneg %p188
        %p317 = pneg %p212
        %p318 = pneg %p209
        %p319 = pneg %p238
        %p320 = pneg %p235
        %s321 = sand.u32 %s225, 1
        %s322 = scalar_lea.sflag [#allocation3], %s321
        %s323 = sand.u32 %s225, 1
        %s324 = scalar_lea.vmem [#allocation2], %s323
        %p325 = scmp.lt.s32.totalorder %s23, 1
        %s326 = scalar_select %p325, %s23, 1
        %s327 = smul.addr %s326, 24
        %s328 = smul.addr %s327, 8
        %s329 = scalar_lea.vmem %s0, %s328
        %v330 = vld [vmem:[%s329] sm:$0xff]
        %v331 = vld [vmem:[%s329 + $0x8] sm:$0xff]
        %v332 = vld [vmem:[%s329 + $0x10] sm:$0xff]
        %v333 = vld [vmem:[%s329 + $0x18] sm:$0xff]
        %v334 = vld [vmem:[%s329 + $0x20] sm:$0xff]
        %v335 = vld [vmem:[%s329 + $0x28] sm:$0xff]
        %v336 = vld [vmem:[%s329 + $0x30] sm:$0xff]
        %v337 = vld [vmem:[%s329 + $0x38] sm:$0xff]
        %v338 = vld [vmem:[%s329 + $0x40] sm:$0xff]
        %v339 = vld [vmem:[%s329 + $0x48] sm:$0xff]
        %v340 = vld [vmem:[%s329 + $0x50] sm:$0xff]
        %v341 = vld [vmem:[%s329 + $0x58] sm:$0xff]
        %v342 = vld [vmem:[%s329 + $0x60] sm:$0xff]
        %v343 = vld [vmem:[%s329 + $0x68] sm:$0xff]
        %v344 = vld [vmem:[%s329 + $0x70] sm:$0xff]
        %v345 = vld [vmem:[%s329 + $0x78] sm:$0xff]
        %v346 = vld [vmem:[%s329 + $0x80] sm:$0xff]
        %v347 = vld [vmem:[%s329 + $0x88] sm:$0xff]
        %v348 = vld [vmem:[%s329 + $0x90] sm:$0xff]
        %v349 = vld [vmem:[%s329 + $0x98] sm:$0xff]
        %v350 = vld [vmem:[%s329 + $0xa0] sm:$0xff]
        %v351 = vld [vmem:[%s329 + $0xa8] sm:$0xff]
        %v352 = vld [vmem:[%s329 + $0xb0] sm:$0xff]
        %v353 = vld [vmem:[%s329 + $0xb8] sm:$0xff]
        %v354 = vld [vmem:[%s1] sm:$0xff]
        %v355 = vld [vmem:[%s1 + $0x8] sm:$0xff]
        %v356 = vld [vmem:[%s1 + $0x10] sm:$0xff]
        %v357 = vld [vmem:[%s1 + $0x18] sm:$0xff]
        %v358 = vld [vmem:[%s1 + $0x20] sm:$0xff]
        %v359 = vld [vmem:[%s1 + $0x28] sm:$0xff]
        %v360 = vld [vmem:[%s1 + $0x30] sm:$0xff]
        %v361 = vld [vmem:[%s1 + $0x38] sm:$0xff]
        %v362 = vld [vmem:[%s1 + $0x40] sm:$0xff]
        %v363 = vld [vmem:[%s1 + $0x48] sm:$0xff]
        %v364 = vld [vmem:[%s1 + $0x50] sm:$0xff]
        %v365 = vld [vmem:[%s1 + $0x58] sm:$0xff]
        %v366 = vld [vmem:[%s1 + $0x60] sm:$0xff]
        %v367 = vld [vmem:[%s1 + $0x68] sm:$0xff]
        %v368 = vld [vmem:[%s1 + $0x70] sm:$0xff]
        %v369 = vld [vmem:[%s1 + $0x78] sm:$0xff]
        %v370 = vld [vmem:[%s1 + $0x80] sm:$0xff]
        %v371 = vld [vmem:[%s1 + $0x88] sm:$0xff]
        %v372 = vld [vmem:[%s1 + $0x90] sm:$0xff]
        %v373 = vld [vmem:[%s1 + $0x98] sm:$0xff]
        %v374 = vld [vmem:[%s1 + $0xa0] sm:$0xff]
        %v375 = vld [vmem:[%s1 + $0xa8] sm:$0xff]
        %v376 = vld [vmem:[%s1 + $0xb0] sm:$0xff]
        %v377 = vld [vmem:[%s1 + $0xb8] sm:$0xff]
        %v378 = vld [vmem:[%s1 + $0xc0] sm:$0xff]
        %v379 = vld [vmem:[%s1 + $0xc8] sm:$0xff]
        %v380 = vld [vmem:[%s1 + $0xd0] sm:$0xff]
        %v381 = vld [vmem:[%s1 + $0xd8] sm:$0xff]
        %v382 = vld [vmem:[%s1 + $0xe0] sm:$0xff]
        %v383 = vld [vmem:[%s1 + $0xe8] sm:$0xff]
        %v384 = vld [vmem:[%s1 + $0xf0] sm:$0xff]
        %v385 = vld [vmem:[%s1 + $0xf8] sm:$0xff]
        %v386 = vld [vmem:[%s1 + $0x100] sm:$0xff]
        %v387 = vld [vmem:[%s1 + $0x108] sm:$0xff]
        %v388 = vld [vmem:[%s1 + $0x110] sm:$0xff]
        %v389 = vld [vmem:[%s1 + $0x118] sm:$0xff]
        %v390 = vld [vmem:[%s1 + $0x120] sm:$0xff]
        %v391 = vld [vmem:[%s1 + $0x128] sm:$0xff]
        %v392 = vld [vmem:[%s1 + $0x130] sm:$0xff]
        %v393 = vld [vmem:[%s1 + $0x138] sm:$0xff]
        %v394 = vld [vmem:[%s1 + $0x140] sm:$0xff]
        %v395 = vld [vmem:[%s1 + $0x148] sm:$0xff]
        %v396 = vld [vmem:[%s1 + $0x150] sm:$0xff]
        %v397 = vld [vmem:[%s1 + $0x158] sm:$0xff]
        %v398 = vld [vmem:[%s1 + $0x160] sm:$0xff]
        %v399 = vld [vmem:[%s1 + $0x168] sm:$0xff]
        %v400 = vld [vmem:[%s1 + $0x170] sm:$0xff]
        %v401 = vld [vmem:[%s1 + $0x178] sm:$0xff]
        %v402 = vld [vmem:[%s1 + $0x180] sm:$0xff]
        %v403 = vld [vmem:[%s1 + $0x188] sm:$0xff]
        %v404 = vld [vmem:[%s1 + $0x190] sm:$0xff]
        %v405 = vld [vmem:[%s1 + $0x198] sm:$0xff]
        %v406 = vld [vmem:[%s1 + $0x1a0] sm:$0xff]
        %v407 = vld [vmem:[%s1 + $0x1a8] sm:$0xff]
        %v408 = vld [vmem:[%s1 + $0x1b0] sm:$0xff]
        %v409 = vld [vmem:[%s1 + $0x1b8] sm:$0xff]
        %v410 = vld [vmem:[%s1 + $0x1c0] sm:$0xff]
        %v411 = vld [vmem:[%s1 + $0x1c8] sm:$0xff]
        %v412 = vld [vmem:[%s1 + $0x1d0] sm:$0xff]
        %v413 = vld [vmem:[%s1 + $0x1d8] sm:$0xff]
        %v414 = vld [vmem:[%s1 + $0x1e0] sm:$0xff]
        %v415 = vld [vmem:[%s1 + $0x1e8] sm:$0xff]
        %v416 = vld [vmem:[%s1 + $0x1f0] sm:$0xff]
        %v417 = vld [vmem:[%s1 + $0x1f8] sm:$0xff]
        %v418 = vld [vmem:[%s1 + $0x200] sm:$0xff]
        %v419 = vld [vmem:[%s1 + $0x208] sm:$0xff]
        %v420 = vld [vmem:[%s1 + $0x210] sm:$0xff]
        %v421 = vld [vmem:[%s1 + $0x218] sm:$0xff]
        %v422 = vld [vmem:[%s1 + $0x220] sm:$0xff]
        %v423 = vld [vmem:[%s1 + $0x228] sm:$0xff]
        %v424 = vld [vmem:[%s1 + $0x230] sm:$0xff]
        %v425 = vld [vmem:[%s1 + $0x238] sm:$0xff]
        %v426 = vld [vmem:[%s1 + $0x240] sm:$0xff]
        %v427 = vld [vmem:[%s1 + $0x248] sm:$0xff]
        %v428 = vld [vmem:[%s1 + $0x250] sm:$0xff]
        %v429 = vld [vmem:[%s1 + $0x258] sm:$0xff]
        %v430 = vld [vmem:[%s1 + $0x260] sm:$0xff]
        %v431 = vld [vmem:[%s1 + $0x268] sm:$0xff]
        %v432 = vld [vmem:[%s1 + $0x270] sm:$0xff]
        %v433 = vld [vmem:[%s1 + $0x278] sm:$0xff]
        %v434 = vld [vmem:[%s1 + $0x280] sm:$0xff]
        %v435 = vld [vmem:[%s1 + $0x288] sm:$0xff]
        %v436 = vld [vmem:[%s1 + $0x290] sm:$0xff]
        %v437 = vld [vmem:[%s1 + $0x298] sm:$0xff]
        %v438 = vld [vmem:[%s1 + $0x2a0] sm:$0xff]
        %v439 = vld [vmem:[%s1 + $0x2a8] sm:$0xff]
        %v440 = vld [vmem:[%s1 + $0x2b0] sm:$0xff]
        %v441 = vld [vmem:[%s1 + $0x2b8] sm:$0xff]
        %v442 = vld [vmem:[%s1 + $0x2c0] sm:$0xff]
        %v443 = vld [vmem:[%s1 + $0x2c8] sm:$0xff]
        %v444 = vld [vmem:[%s1 + $0x2d0] sm:$0xff]
        %v445 = vld [vmem:[%s1 + $0x2d8] sm:$0xff]
        %v446 = vld [vmem:[%s1 + $0x2e0] sm:$0xff]
        %v447 = vld [vmem:[%s1 + $0x2e8] sm:$0xff]
        %v448 = vld [vmem:[%s1 + $0x2f0] sm:$0xff]
        %v449 = vld [vmem:[%s1 + $0x2f8] sm:$0xff]
        %v450 = vld [vmem:[%s1 + $0x300] sm:$0xff]
        %v451 = vld [vmem:[%s1 + $0x308] sm:$0xff]
        %v452 = vld [vmem:[%s1 + $0x310] sm:$0xff]
        %v453 = vld [vmem:[%s1 + $0x318] sm:$0xff]
        %v454 = vld [vmem:[%s1 + $0x320] sm:$0xff]
        %v455 = vld [vmem:[%s1 + $0x328] sm:$0xff]
        %v456 = vld [vmem:[%s1 + $0x330] sm:$0xff]
        %v457 = vld [vmem:[%s1 + $0x338] sm:$0xff]
        %v458 = vld [vmem:[%s1 + $0x340] sm:$0xff]
        %v459 = vld [vmem:[%s1 + $0x348] sm:$0xff]
        %v460 = vld [vmem:[%s1 + $0x350] sm:$0xff]
        %v461 = vld [vmem:[%s1 + $0x358] sm:$0xff]
        %v462 = vld [vmem:[%s2] sm:$0x7]
        %v464 = vlaneseq
        %v465 = vshrl.u32 %v464, 7
        %v466 = vsub.s32 0, %v465
        %v467 = vrot.slane %v462, %v466
        %v468 = vlaneseq
        %v469 = vshrl.u32 %v468, 7
        %v470 = vsub.s32 1, %v469
        %v471 = vrot.slane %v462, %v470
        %v472 = vlaneseq
        %v473 = vshrl.u32 %v472, 7
        %v474 = vsub.s32 2, %v473
        %v475 = vrot.slane %v462, %v474
        %vm479 = vcmask 261120
        %v481 = vsel %vm479, %v332, 0
        %v484 = vsel %vm479, %v335, 0
        %v487 = vsel %vm479, %v338, 0
        %v490 = vsel %vm479, %v341, 0
        %v493 = vsel %vm479, %v344, 0
        %v496 = vsel %vm479, %v347, 0
        %v499 = vsel %vm479, %v350, 0
        %v502 = vsel %vm479, %v353, 0
        %504 = vmatprep.subr.mxu0 %v400
        %505 = vmatpush1.msra.mxu0 %v399
        %506 = vmatprep.subr.mxu0 %v397
        %507 = vmatpush1.msra.mxu0 %v396
        %508 = vmatprep.subr.mxu0 %v394
        %509 = vmatpush1.msra.mxu0 %v393
        %510 = vmatprep.subr.mxu0 %v391
        %511 = vmatpush1.msra.mxu0 %v390
        %512 = vmatprep.subr.mxu0 %v388
        %513 = vmatpush1.msra.mxu0 %v387
        %514 = vmatprep.subr.mxu0 %v385
        %515 = vmatpush1.msra.mxu0 %v384
        %516 = vmatprep.subr.mxu0 %v382
        %517 = vmatpush1.msra.mxu0 %v381
        %518 = vmatprep.subr.mxu0 %v379
        %519 = vmatpush1.msra.mxu0 %v378
        %520 = vmatprep.subr.mxu0 %v376
        %521 = vmatpush1.msra.mxu0 %v375
        %522 = vmatprep.subr.mxu0 %v373
        %523 = vmatpush1.msra.mxu0 %v372
        %524 = vmatprep.subr.mxu0 %v370
        %525 = vmatpush1.msra.mxu0 %v369
        %526 = vmatprep.subr.mxu0 %v367
        %527 = vmatpush1.msra.mxu0 %v366
        %528 = vmatprep.subr.mxu0 %v364
        %529 = vmatpush1.msra.mxu0 %v363
        %530 = vmatprep.subr.mxu0 %v361
        %531 = vmatpush1.msra.mxu0 %v360
        %532 = vmatprep.subr.mxu0 %v358
        %533 = vmatpush1.msra.mxu0 %v357
        %534 = vmatprep.subr.mxu0 %v355
        %535 = vmatpush1.msra.mxu0 %v354
        %536 = vmatprep.subr.mxu0 %v448
        %537 = vmatpush2.msra.mxu0 %v447
        %538 = vmatprep.subr.mxu0 %v445
        %539 = vmatpush2.msra.mxu0 %v444
        %540 = vmatprep.subr.mxu0 %v442
        %541 = vmatpush2.msra.mxu0 %v441
        %542 = vmatprep.subr.mxu0 %v439
        %543 = vmatpush2.msra.mxu0 %v438
        %544 = vmatprep.subr.mxu0 %v436
        %545 = vmatpush2.msra.mxu0 %v435
        %546 = vmatprep.subr.mxu0 %v433
        %547 = vmatpush2.msra.mxu0 %v432
        %548 = vmatprep.subr.mxu0 %v430
        %549 = vmatpush2.msra.mxu0 %v429
        %550 = vmatprep.subr.mxu0 %v427
        %551 = vmatpush2.msra.mxu0 %v426
        %552 = vmatprep.subr.mxu0 %v424
        %553 = vmatpush2.msra.mxu0 %v423
        %554 = vmatprep.subr.mxu0 %v421
        %555 = vmatpush2.msra.mxu0 %v420
        %556 = vmatprep.subr.mxu0 %v418
        %557 = vmatpush2.msra.mxu0 %v417
        %558 = vmatprep.subr.mxu0 %v415
        %559 = vmatpush2.msra.mxu0 %v414
        %560 = vmatprep.subr.mxu0 %v412
        %561 = vmatpush2.msra.mxu0 %v411
        %562 = vmatprep.subr.mxu0 %v409
        %563 = vmatpush2.msra.mxu0 %v408
        %564 = vmatprep.subr.mxu0 %v406
        %565 = vmatpush2.msra.mxu0 %v405
        %566 = vmatprep.subr.mxu0 %v403
        %567 = vmatpush2.msra.mxu0 %v402
        %568 = vmatprep.mubr.f32.mxu0 %v331
        %569 = vmatmul.mubr.f32.gmra.mxu0 %v330
        %v570 = vpop.f32.mrf.mxu0
        %v571 = vadd.f32 %v467, %v570
        %v572 = vpop.f32.mrf.mxu0
        %v573 = vadd.f32 %v471, %v572
        %574 = vmatprep.mubr.f32.mxu0 %v334
        %575 = vmatmul.mubr.f32.gmra.mxu0 %v333
        %v576 = vpop.f32.mrf.mxu0
        %v577 = vadd.f32 %v467, %v576
        %v578 = vpop.f32.mrf.mxu0
        %v579 = vadd.f32 %v471, %v578
        %580 = vmatprep.mubr.f32.mxu0 %v337
        %581 = vmatmul.mubr.f32.gmra.mxu0 %v336
        %v582 = vpop.f32.mrf.mxu0
        %v583 = vadd.f32 %v467, %v582
        %v584 = vpop.f32.mrf.mxu0
        %v585 = vadd.f32 %v471, %v584
        %586 = vmatprep.mubr.f32.mxu0 %v340
        %587 = vmatmul.mubr.f32.gmra.mxu0 %v339
        %v588 = vpop.f32.mrf.mxu0
        %v589 = vadd.f32 %v467, %v588
        %v590 = vpop.f32.mrf.mxu0
        %v591 = vadd.f32 %v471, %v590
        %592 = vmatprep.mubr.f32.mxu0 %v343
        %593 = vmatmul.mubr.f32.gmra.mxu0 %v342
        %v594 = vpop.f32.mrf.mxu0
        %v595 = vadd.f32 %v467, %v594
        %v596 = vpop.f32.mrf.mxu0
        %v597 = vadd.f32 %v471, %v596
        %598 = vmatprep.mubr.f32.mxu0 %v346
        %599 = vmatmul.mubr.f32.gmra.mxu0 %v345
        %v600 = vpop.f32.mrf.mxu0
        %v601 = vadd.f32 %v467, %v600
        %v602 = vpop.f32.mrf.mxu0
        %v603 = vadd.f32 %v471, %v602
        %604 = vmatprep.mubr.f32.mxu0 %v349
        %605 = vmatmul.mubr.f32.gmra.mxu0 %v348
        %v606 = vpop.f32.mrf.mxu0
        %v607 = vadd.f32 %v467, %v606
        %v608 = vpop.f32.mrf.mxu0
        %v609 = vadd.f32 %v471, %v608
        %610 = vmatprep.mubr.f32.mxu0 %v352
        %611 = vmatmul.mubr.f32.gmra.mxu0 %v351
        %v612 = vpop.f32.mrf.mxu0
        %v613 = vadd.f32 %v467, %v612
        %v614 = vpop.f32.mrf.mxu0
        %v615 = vadd.f32 %v471, %v614
        %616 = vdwg.mxu0
        %617 = vmatprep.subr.mxu0 0.0
        %618 = vmatpush1.msra.mxu0 0.0
        %619 = vmatprep.subr.mxu0 0.0
        %620 = vmatpush1.msra.mxu0 0.0
        %621 = vmatprep.subr.mxu0 0.0
        %622 = vmatpush1.msra.mxu0 0.0
        %623 = vmatprep.subr.mxu0 0.0
        %624 = vmatpush1.msra.mxu0 0.0
        %625 = vmatprep.subr.mxu0 0.0
        %626 = vmatpush1.msra.mxu0 0.0
        %627 = vmatprep.subr.mxu0 0.0
        %628 = vmatpush1.msra.mxu0 0.0
        %629 = vmatprep.subr.mxu0 0.0
        %630 = vmatpush1.msra.mxu0 0.0
        %631 = vmatprep.subr.mxu0 0.0
        %632 = vmatpush1.msra.mxu0 0.0
        %633 = vmatprep.subr.mxu0 0.0
        %634 = vmatpush1.msra.mxu0 0.0
        %635 = vmatprep.subr.mxu0 0.0
        %636 = vmatpush1.msra.mxu0 0.0
        %637 = vmatprep.subr.mxu0 0.0
        %638 = vmatpush1.msra.mxu0 0.0
        %639 = vmatprep.subr.mxu0 0.0
        %640 = vmatpush1.msra.mxu0 0.0
        %641 = vmatprep.subr.mxu0 %v460
        %642 = vmatpush1.msra.mxu0 %v459
        %643 = vmatprep.subr.mxu0 %v457
        %644 = vmatpush1.msra.mxu0 %v456
        %645 = vmatprep.subr.mxu0 %v454
        %646 = vmatpush1.msra.mxu0 %v453
        %647 = vmatprep.subr.mxu0 %v451
        %648 = vmatpush1.msra.mxu0 %v450
        %649 = vmatprep.subr.mxu0 0.0
        %650 = vmatpush2.msra.mxu0 0.0
        %651 = vmatprep.subr.mxu0 0.0
        %652 = vmatpush2.msra.mxu0 0.0
        %653 = vmatprep.subr.mxu0 0.0
        %654 = vmatpush2.msra.mxu0 0.0
        %655 = vmatprep.subr.mxu0 0.0
        %656 = vmatpush2.msra.mxu0 0.0
        %657 = vmatprep.subr.mxu0 0.0
        %658 = vmatpush2.msra.mxu0 0.0
        %659 = vmatprep.subr.mxu0 0.0
        %660 = vmatpush2.msra.mxu0 0.0
        %661 = vmatprep.subr.mxu0 0.0
        %662 = vmatpush2.msra.mxu0 0.0
        %663 = vmatprep.subr.mxu0 0.0
        %664 = vmatpush2.msra.mxu0 0.0
        %665 = vmatprep.subr.mxu0 0.0
        %666 = vmatpush2.msra.mxu0 0.0
        %667 = vmatprep.subr.mxu0 0.0
        %668 = vmatpush2.msra.mxu0 0.0
        %669 = vmatprep.subr.mxu0 0.0
        %670 = vmatpush2.msra.mxu0 0.0
        %671 = vmatprep.subr.mxu0 0.0
        %672 = vmatpush2.msra.mxu0 0.0
        %673 = vmatprep.subr.mxu0 0.0
        %674 = vmatpush2.msra.mxu0 0.0
        %675 = vmatprep.subr.mxu0 0.0
        %676 = vmatpush2.msra.mxu0 0.0
        %677 = vmatprep.subr.mxu0 0.0
        %678 = vmatpush2.msra.mxu0 0.0
        %679 = vmatprep.subr.mxu0 0.0
        %680 = vmatpush2.msra.mxu0 0.0
        %681 = vmatprep.mubr.f32.mxu0 0.0
        %682 = vmatmul.mubr.f32.gmra.mxu0 %v481
        %v683 = vpop.f32.mrf.mxu0
        %v684 = vadd.f32 %v571, %v683
        %v685 = vpop.f32.mrf.mxu0
        %v686 = vadd.f32 %v573, %v685
        %687 = vmatprep.mubr.f32.mxu0 0.0
        %688 = vmatmul.mubr.f32.gmra.mxu0 %v484
        %v689 = vpop.f32.mrf.mxu0
        %v690 = vadd.f32 %v577, %v689
        %v691 = vpop.f32.mrf.mxu0
        %v692 = vadd.f32 %v579, %v691
        %693 = vmatprep.mubr.f32.mxu0 0.0
        %694 = vmatmul.mubr.f32.gmra.mxu0 %v487
        %v695 = vpop.f32.mrf.mxu0
        %v696 = vadd.f32 %v583, %v695
        %v697 = vpop.f32.mrf.mxu0
        %v698 = vadd.f32 %v585, %v697
        %699 = vmatprep.mubr.f32.mxu0 0.0
        %700 = vmatmul.mubr.f32.gmra.mxu0 %v490
        %v701 = vpop.f32.mrf.mxu0
        %v702 = vadd.f32 %v589, %v701
        %v703 = vpop.f32.mrf.mxu0
        %v704 = vadd.f32 %v591, %v703
        %705 = vmatprep.mubr.f32.mxu0 0.0
        %706 = vmatmul.mubr.f32.gmra.mxu0 %v493
        %v707 = vpop.f32.mrf.mxu0
        %v708 = vadd.f32 %v595, %v707
        %v709 = vpop.f32.mrf.mxu0
        %v710 = vadd.f32 %v597, %v709
        %711 = vmatprep.mubr.f32.mxu0 0.0
        %712 = vmatmul.mubr.f32.gmra.mxu0 %v496
        %v713 = vpop.f32.mrf.mxu0
        %v714 = vadd.f32 %v601, %v713
        %v715 = vpop.f32.mrf.mxu0
        %v716 = vadd.f32 %v603, %v715
        %717 = vmatprep.mubr.f32.mxu0 0.0
        %718 = vmatmul.mubr.f32.gmra.mxu0 %v499
        %v719 = vpop.f32.mrf.mxu0
        %v720 = vadd.f32 %v607, %v719
        %v721 = vpop.f32.mrf.mxu0
        %v722 = vadd.f32 %v609, %v721
        %723 = vmatprep.mubr.f32.mxu0 0.0
        %724 = vmatmul.mubr.f32.gmra.mxu0 %v502
        %v725 = vpop.f32.mrf.mxu0
        %v726 = vadd.f32 %v613, %v725
        %v727 = vpop.f32.mrf.mxu0
        %v728 = vadd.f32 %v615, %v727
        %729 = vdwg.mxu0
        %730 = vmatprep.subr.mxu0 0.0
        %731 = vmatpush1.msra.mxu0 %v401
        %732 = vmatprep.subr.mxu0 0.0
        %733 = vmatpush1.msra.mxu0 %v398
        %734 = vmatprep.subr.mxu0 0.0
        %735 = vmatpush1.msra.mxu0 %v395
        %736 = vmatprep.subr.mxu0 0.0
        %737 = vmatpush1.msra.mxu0 %v392
        %738 = vmatprep.subr.mxu0 0.0
        %739 = vmatpush1.msra.mxu0 %v389
        %740 = vmatprep.subr.mxu0 0.0
        %741 = vmatpush1.msra.mxu0 %v386
        %742 = vmatprep.subr.mxu0 0.0
        %743 = vmatpush1.msra.mxu0 %v383
        %744 = vmatprep.subr.mxu0 0.0
        %745 = vmatpush1.msra.mxu0 %v380
        %746 = vmatprep.subr.mxu0 0.0
        %747 = vmatpush1.msra.mxu0 %v377
        %748 = vmatprep.subr.mxu0 0.0
        %749 = vmatpush1.msra.mxu0 %v374
        %750 = vmatprep.subr.mxu0 0.0
        %751 = vmatpush1.msra.mxu0 %v371
        %752 = vmatprep.subr.mxu0 0.0
        %753 = vmatpush1.msra.mxu0 %v368
        %754 = vmatprep.subr.mxu0 0.0
        %755 = vmatpush1.msra.mxu0 %v365
        %756 = vmatprep.subr.mxu0 0.0
        %757 = vmatpush1.msra.mxu0 %v362
        %758 = vmatprep.subr.mxu0 0.0
        %759 = vmatpush1.msra.mxu0 %v359
        %760 = vmatprep.subr.mxu0 0.0
        %761 = vmatpush1.msra.mxu0 %v356
        %762 = vmatprep.subr.mxu0 0.0
        %763 = vmatpush2.msra.mxu0 %v449
        %764 = vmatprep.subr.mxu0 0.0
        %765 = vmatpush2.msra.mxu0 %v446
        %766 = vmatprep.subr.mxu0 0.0
        %767 = vmatpush2.msra.mxu0 %v443
        %768 = vmatprep.subr.mxu0 0.0
        %769 = vmatpush2.msra.mxu0 %v440
        %770 = vmatprep.subr.mxu0 0.0
        %771 = vmatpush2.msra.mxu0 %v437
        %772 = vmatprep.subr.mxu0 0.0
        %773 = vmatpush2.msra.mxu0 %v434
        %774 = vmatprep.subr.mxu0 0.0
        %775 = vmatpush2.msra.mxu0 %v431
        %776 = vmatprep.subr.mxu0 0.0
        %777 = vmatpush2.msra.mxu0 %v428
        %778 = vmatprep.subr.mxu0 0.0
        %779 = vmatpush2.msra.mxu0 %v425
        %780 = vmatprep.subr.mxu0 0.0
        %781 = vmatpush2.msra.mxu0 %v422
        %782 = vmatprep.subr.mxu0 0.0
        %783 = vmatpush2.msra.mxu0 %v419
        %784 = vmatprep.subr.mxu0 0.0
        %785 = vmatpush2.msra.mxu0 %v416
        %786 = vmatprep.subr.mxu0 0.0
        %787 = vmatpush2.msra.mxu0 %v413
        %788 = vmatprep.subr.mxu0 0.0
        %789 = vmatpush2.msra.mxu0 %v410
        %790 = vmatprep.subr.mxu0 0.0
        %791 = vmatpush2.msra.mxu0 %v407
        %792 = vmatprep.subr.mxu0 0.0
        %793 = vmatpush2.msra.mxu0 %v404
        %794 = vmatprep.mubr.f32.mxu0 %v331
        %795 = vmatmul.mubr.f32.gmra.mxu0 %v330
        %v796 = vpop.f32.mrf.mxu0
        %v797 = vadd.f32 %v475, %v796
        %v798 = vpop.f32.mrf.mxu0
        %799 = vmatprep.mubr.f32.mxu0 %v334
        %800 = vmatmul.mubr.f32.gmra.mxu0 %v333
        %v801 = vpop.f32.mrf.mxu0
        %v802 = vadd.f32 %v475, %v801
        %v803 = vpop.f32.mrf.mxu0
        %804 = vmatprep.mubr.f32.mxu0 %v337
        %805 = vmatmul.mubr.f32.gmra.mxu0 %v336
        %v806 = vpop.f32.mrf.mxu0
        %v807 = vadd.f32 %v475, %v806
        %v808 = vpop.f32.mrf.mxu0
        %809 = vmatprep.mubr.f32.mxu0 %v340
        %810 = vmatmul.mubr.f32.gmra.mxu0 %v339
        %v811 = vpop.f32.mrf.mxu0
        %v812 = vadd.f32 %v475, %v811
        %v813 = vpop.f32.mrf.mxu0
        %814 = vmatprep.mubr.f32.mxu0 %v343
        %815 = vmatmul.mubr.f32.gmra.mxu0 %v342
        %v816 = vpop.f32.mrf.mxu0
        %v817 = vadd.f32 %v475, %v816
        %v818 = vpop.f32.mrf.mxu0
        %819 = vmatprep.mubr.f32.mxu0 %v346
        %820 = vmatmul.mubr.f32.gmra.mxu0 %v345
        %v821 = vpop.f32.mrf.mxu0
        %v822 = vadd.f32 %v475, %v821
        %v823 = vpop.f32.mrf.mxu0
        %824 = vmatprep.mubr.f32.mxu0 %v349
        %825 = vmatmul.mubr.f32.gmra.mxu0 %v348
        %v826 = vpop.f32.mrf.mxu0
        %v827 = vadd.f32 %v475, %v826
        %v828 = vpop.f32.mrf.mxu0
        %829 = vmatprep.mubr.f32.mxu0 %v352
        %830 = vmatmul.mubr.f32.gmra.mxu0 %v351
        %v831 = vpop.f32.mrf.mxu0
        %v832 = vadd.f32 %v475, %v831
        %v833 = vpop.f32.mrf.mxu0
        %834 = vdwg.mxu0
        %835 = vmatprep.subr.mxu0 0.0
        %836 = vmatpush1.msra.mxu0 0.0
        %837 = vmatprep.subr.mxu0 0.0
        %838 = vmatpush1.msra.mxu0 0.0
        %839 = vmatprep.subr.mxu0 0.0
        %840 = vmatpush1.msra.mxu0 0.0
        %841 = vmatprep.subr.mxu0 0.0
        %842 = vmatpush1.msra.mxu0 0.0
        %843 = vmatprep.subr.mxu0 0.0
        %844 = vmatpush1.msra.mxu0 0.0
        %845 = vmatprep.subr.mxu0 0.0
        %846 = vmatpush1.msra.mxu0 0.0
        %847 = vmatprep.subr.mxu0 0.0
        %848 = vmatpush1.msra.mxu0 0.0
        %849 = vmatprep.subr.mxu0 0.0
        %850 = vmatpush1.msra.mxu0 0.0
        %851 = vmatprep.subr.mxu0 0.0
        %852 = vmatpush1.msra.mxu0 0.0
        %853 = vmatprep.subr.mxu0 0.0
        %854 = vmatpush1.msra.mxu0 0.0
        %855 = vmatprep.subr.mxu0 0.0
        %856 = vmatpush1.msra.mxu0 0.0
        %857 = vmatprep.subr.mxu0 0.0
        %858 = vmatpush1.msra.mxu0 0.0
        %859 = vmatprep.subr.mxu0 0.0
        %860 = vmatpush1.msra.mxu0 %v461
        %861 = vmatprep.subr.mxu0 0.0
        %862 = vmatpush1.msra.mxu0 %v458
        %863 = vmatprep.subr.mxu0 0.0
        %864 = vmatpush1.msra.mxu0 %v455
        %865 = vmatprep.subr.mxu0 0.0
        %866 = vmatpush1.msra.mxu0 %v452
        %867 = vmatprep.subr.mxu0 0.0
        %868 = vmatpush2.msra.mxu0 0.0
        %869 = vmatprep.subr.mxu0 0.0
        %870 = vmatpush2.msra.mxu0 0.0
        %871 = vmatprep.subr.mxu0 0.0
        %872 = vmatpush2.msra.mxu0 0.0
        %873 = vmatprep.subr.mxu0 0.0
        %874 = vmatpush2.msra.mxu0 0.0
        %875 = vmatprep.subr.mxu0 0.0
        %876 = vmatpush2.msra.mxu0 0.0
        %877 = vmatprep.subr.mxu0 0.0
        %878 = vmatpush2.msra.mxu0 0.0
        %879 = vmatprep.subr.mxu0 0.0
        %880 = vmatpush2.msra.mxu0 0.0
        %881 = vmatprep.subr.mxu0 0.0
        %882 = vmatpush2.msra.mxu0 0.0
        %883 = vmatprep.subr.mxu0 0.0
        %884 = vmatpush2.msra.mxu0 0.0
        %885 = vmatprep.subr.mxu0 0.0
        %886 = vmatpush2.msra.mxu0 0.0
        %887 = vmatprep.subr.mxu0 0.0
        %888 = vmatpush2.msra.mxu0 0.0
        %889 = vmatprep.subr.mxu0 0.0
        %890 = vmatpush2.msra.mxu0 0.0
        %891 = vmatprep.subr.mxu0 0.0
        %892 = vmatpush2.msra.mxu0 0.0
        %893 = vmatprep.subr.mxu0 0.0
        %894 = vmatpush2.msra.mxu0 0.0
        %895 = vmatprep.subr.mxu0 0.0
        %896 = vmatpush2.msra.mxu0 0.0
        %897 = vmatprep.subr.mxu0 0.0
        %898 = vmatpush2.msra.mxu0 0.0
        %899 = vmatprep.mubr.f32.mxu0 0.0
        %900 = vmatmul.mubr.f32.gmra.mxu0 %v481
        %v901 = vpop.f32.mrf.mxu0
        %v902 = vadd.f32 %v797, %v901
        %v903 = vpop.f32.mrf.mxu0
        %904 = vmatprep.mubr.f32.mxu0 0.0
        %905 = vmatmul.mubr.f32.gmra.mxu0 %v484
        %v906 = vpop.f32.mrf.mxu0
        %v907 = vadd.f32 %v802, %v906
        %v908 = vpop.f32.mrf.mxu0
        %909 = vmatprep.mubr.f32.mxu0 0.0
        %910 = vmatmul.mubr.f32.gmra.mxu0 %v487
        %v911 = vpop.f32.mrf.mxu0
        %v912 = vadd.f32 %v807, %v911
        %v913 = vpop.f32.mrf.mxu0
        %914 = vmatprep.mubr.f32.mxu0 0.0
        %915 = vmatmul.mubr.f32.gmra.mxu0 %v490
        %v916 = vpop.f32.mrf.mxu0
        %v917 = vadd.f32 %v812, %v916
        %v918 = vpop.f32.mrf.mxu0
        %919 = vmatprep.mubr.f32.mxu0 0.0
        %920 = vmatmul.mubr.f32.gmra.mxu0 %v493
        %v921 = vpop.f32.mrf.mxu0
        %v922 = vadd.f32 %v817, %v921
        %v923 = vpop.f32.mrf.mxu0
        %924 = vmatprep.mubr.f32.mxu0 0.0
        %925 = vmatmul.mubr.f32.gmra.mxu0 %v496
        %v926 = vpop.f32.mrf.mxu0
        %v927 = vadd.f32 %v822, %v926
        %v928 = vpop.f32.mrf.mxu0
        %929 = vmatprep.mubr.f32.mxu0 0.0
        %930 = vmatmul.mubr.f32.gmra.mxu0 %v499
        %v931 = vpop.f32.mrf.mxu0
        %v932 = vadd.f32 %v827, %v931
        %v933 = vpop.f32.mrf.mxu0
        %934 = vmatprep.mubr.f32.mxu0 0.0
        %935 = vmatmul.mubr.f32.gmra.mxu0 %v502
        %v936 = vpop.f32.mrf.mxu0
        %v937 = vadd.f32 %v832, %v936
        %v938 = vpop.f32.mrf.mxu0
        %939 = vdwg.mxu0
        %v940 = vmul.f32 %v684, 0.5
        %v941 = vmul.f32 %v686, 0.5
        %v942 = vmul.f32 %v690, 0.5
        %v943 = vmul.f32 %v692, 0.5
        %v944 = vmul.f32 %v696, 0.5
        %v945 = vmul.f32 %v698, 0.5
        %v946 = vmul.f32 %v702, 0.5
        %v947 = vmul.f32 %v704, 0.5
        %v948 = vmul.f32 %v708, 0.5
        %v949 = vmul.f32 %v710, 0.5
        %v950 = vmul.f32 %v714, 0.5
        %v951 = vmul.f32 %v716, 0.5
        %v952 = vmul.f32 %v720, 0.5
        %v953 = vmul.f32 %v722, 0.5
        %v954 = vmul.f32 %v726, 0.5
        %v955 = vmul.f32 %v728, 0.5
        %v956 = vmul.f32 %v684, 0.70710677
        %v957 = vmul.f32 %v686, 0.70710677
        %v958 = vmul.f32 %v690, 0.70710677
        %v959 = vmul.f32 %v692, 0.70710677
        %v960 = vmul.f32 %v696, 0.70710677
        %v961 = vmul.f32 %v698, 0.70710677
        %v962 = vmul.f32 %v702, 0.70710677
        %v963 = vmul.f32 %v704, 0.70710677
        %v964 = vmul.f32 %v708, 0.70710677
        %v965 = vmul.f32 %v710, 0.70710677
        %v966 = vmul.f32 %v714, 0.70710677
        %v967 = vmul.f32 %v716, 0.70710677
        %v968 = vmul.f32 %v720, 0.70710677
        %v969 = vmul.f32 %v722, 0.70710677
        %v970 = vmul.f32 %v726, 0.70710677
        %v971 = vmul.f32 %v728, 0.70710677
        %v972 = verf.f32.pop %v956
        %v973 = verf.f32.pop %v957
        %v974 = verf.f32.pop %v958
        %v975 = verf.f32.pop %v959
        %v976 = verf.f32.pop %v960
        %v977 = verf.f32.pop %v961
        %v978 = verf.f32.pop %v962
        %v979 = verf.f32.pop %v963
        %v980 = verf.f32.pop %v964
        %v981 = verf.f32.pop %v965
        %v982 = verf.f32.pop %v966
        %v983 = verf.f32.pop %v967
        %v984 = verf.f32.pop %v968
        %v985 = verf.f32.pop %v969
        %v986 = verf.f32.pop %v970
        %v987 = verf.f32.pop %v971
        %v988 = vadd.f32 %v972, 1.0
        %v989 = vadd.f32 %v973, 1.0
        %v990 = vadd.f32 %v974, 1.0
        %v991 = vadd.f32 %v975, 1.0
        %v992 = vadd.f32 %v976, 1.0
        %v993 = vadd.f32 %v977, 1.0
        %v994 = vadd.f32 %v978, 1.0
        %v995 = vadd.f32 %v979, 1.0
        %v996 = vadd.f32 %v980, 1.0
        %v997 = vadd.f32 %v981, 1.0
        %v998 = vadd.f32 %v982, 1.0
        %v999 = vadd.f32 %v983, 1.0
        %v1000 = vadd.f32 %v984, 1.0
        %v1001 = vadd.f32 %v985, 1.0
        %v1002 = vadd.f32 %v986, 1.0
        %v1003 = vadd.f32 %v987, 1.0
        %v1004 = vmul.f32 %v940, %v988
        %v1005 = vmul.f32 %v941, %v989
        %v1006 = vmul.f32 %v942, %v990
        %v1007 = vmul.f32 %v943, %v991
        %v1008 = vmul.f32 %v944, %v992
        %v1009 = vmul.f32 %v945, %v993
        %v1010 = vmul.f32 %v946, %v994
        %v1011 = vmul.f32 %v947, %v995
        %v1012 = vmul.f32 %v948, %v996
        %v1013 = vmul.f32 %v949, %v997
        %v1014 = vmul.f32 %v950, %v998
        %v1015 = vmul.f32 %v951, %v999
        %v1016 = vmul.f32 %v952, %v1000
        %v1017 = vmul.f32 %v953, %v1001
        %v1018 = vmul.f32 %v954, %v1002
        %v1019 = vmul.f32 %v955, %v1003
        %v1020 = vld [vmem:[%s3] sm:$0xff]
        %v1021 = vld [vmem:[%s3 + $0x8] sm:$0xff]
        %v1022 = vld [vmem:[%s3 + $0x10] sm:$0xff]
        %v1023 = vld [vmem:[%s3 + $0x18] sm:$0xff]
        %v1024 = vld [vmem:[%s3 + $0x20] sm:$0xff]
        %v1025 = vld [vmem:[%s3 + $0x28] sm:$0xff]
        %v1026 = vld [vmem:[%s3 + $0x30] sm:$0xff]
        %v1027 = vld [vmem:[%s3 + $0x38] sm:$0xff]
        %v1028 = vld [vmem:[%s3 + $0x40] sm:$0xff]
        %v1029 = vld [vmem:[%s3 + $0x48] sm:$0xff]
        %v1030 = vld [vmem:[%s3 + $0x50] sm:$0xff]
        %v1031 = vld [vmem:[%s3 + $0x58] sm:$0xff]
        %v1032 = vld [vmem:[%s3 + $0x60] sm:$0xff]
        %v1033 = vld [vmem:[%s3 + $0x68] sm:$0xff]
        %v1034 = vld [vmem:[%s3 + $0x70] sm:$0xff]
        %v1035 = vld [vmem:[%s3 + $0x78] sm:$0xff]
        %v1036 = vld [vmem:[%s3 + $0x80] sm:$0xff]
        %v1037 = vld [vmem:[%s3 + $0x88] sm:$0xff]
        %v1038 = vld [vmem:[%s3 + $0x90] sm:$0xff]
        %v1039 = vld [vmem:[%s3 + $0x98] sm:$0xff]
        %v1040 = vld [vmem:[%s3 + $0xa0] sm:$0xff]
        %v1041 = vld [vmem:[%s3 + $0xa8] sm:$0xff]
        %v1042 = vld [vmem:[%s3 + $0xb0] sm:$0xff]
        %v1043 = vld [vmem:[%s3 + $0xb8] sm:$0xff]
        %v1044 = vld [vmem:[%s3 + $0xc0] sm:$0xff]
        %v1045 = vld [vmem:[%s3 + $0xc8] sm:$0xff]
        %v1046 = vld [vmem:[%s3 + $0xd0] sm:$0xff]
        %v1047 = vld [vmem:[%s3 + $0xd8] sm:$0xff]
        %v1048 = vld [vmem:[%s3 + $0xe0] sm:$0xff]
        %v1049 = vld [vmem:[%s3 + $0xe8] sm:$0xff]
        %v1050 = vld [vmem:[%s3 + $0xf0] sm:$0xff]
        %v1051 = vld [vmem:[%s3 + $0xf8] sm:$0xff]
        %v1052 = vld [vmem:[%s4] sm:$0x1]
        %v1054 = vlaneseq
        %v1055 = vshrl.u32 %v1054, 7
        %v1056 = vsub.s32 0, %v1055
        %v1057 = vrot.slane %v1052, %v1056
        %1059 = vmatprep.subr.mxu0 0.0
        %1060 = vmatpush1.msra.mxu0 %v1035
        %1061 = vmatprep.subr.mxu0 0.0
        %1062 = vmatpush1.msra.mxu0 %v1034
        %1063 = vmatprep.subr.mxu0 0.0
        %1064 = vmatpush1.msra.mxu0 %v1033
        %1065 = vmatprep.subr.mxu0 0.0
        %1066 = vmatpush1.msra.mxu0 %v1032
        %1067 = vmatprep.subr.mxu0 0.0
        %1068 = vmatpush1.msra.mxu0 %v1031
        %1069 = vmatprep.subr.mxu0 0.0
        %1070 = vmatpush1.msra.mxu0 %v1030
        %1071 = vmatprep.subr.mxu0 0.0
        %1072 = vmatpush1.msra.mxu0 %v1029
        %1073 = vmatprep.subr.mxu0 0.0
        %1074 = vmatpush1.msra.mxu0 %v1028
        %1075 = vmatprep.subr.mxu0 0.0
        %1076 = vmatpush1.msra.mxu0 %v1027
        %1077 = vmatprep.subr.mxu0 0.0
        %1078 = vmatpush1.msra.mxu0 %v1026
        %1079 = vmatprep.subr.mxu0 0.0
        %1080 = vmatpush1.msra.mxu0 %v1025
        %1081 = vmatprep.subr.mxu0 0.0
        %1082 = vmatpush1.msra.mxu0 %v1024
        %1083 = vmatprep.subr.mxu0 0.0
        %1084 = vmatpush1.msra.mxu0 %v1023
        %1085 = vmatprep.subr.mxu0 0.0
        %1086 = vmatpush1.msra.mxu0 %v1022
        %1087 = vmatprep.subr.mxu0 0.0
        %1088 = vmatpush1.msra.mxu0 %v1021
        %1089 = vmatprep.subr.mxu0 0.0
        %1090 = vmatpush1.msra.mxu0 %v1020
        %1091 = vmatprep.subr.mxu0 0.0
        %1092 = vmatpush2.msra.mxu0 %v1051
        %1093 = vmatprep.subr.mxu0 0.0
        %1094 = vmatpush2.msra.mxu0 %v1050
        %1095 = vmatprep.subr.mxu0 0.0
        %1096 = vmatpush2.msra.mxu0 %v1049
        %1097 = vmatprep.subr.mxu0 0.0
        %1098 = vmatpush2.msra.mxu0 %v1048
        %1099 = vmatprep.subr.mxu0 0.0
        %1100 = vmatpush2.msra.mxu0 %v1047
        %1101 = vmatprep.subr.mxu0 0.0
        %1102 = vmatpush2.msra.mxu0 %v1046
        %1103 = vmatprep.subr.mxu0 0.0
        %1104 = vmatpush2.msra.mxu0 %v1045
        %1105 = vmatprep.subr.mxu0 0.0
        %1106 = vmatpush2.msra.mxu0 %v1044
        %1107 = vmatprep.subr.mxu0 0.0
        %1108 = vmatpush2.msra.mxu0 %v1043
        %1109 = vmatprep.subr.mxu0 0.0
        %1110 = vmatpush2.msra.mxu0 %v1042
        %1111 = vmatprep.subr.mxu0 0.0
        %1112 = vmatpush2.msra.mxu0 %v1041
        %1113 = vmatprep.subr.mxu0 0.0
        %1114 = vmatpush2.msra.mxu0 %v1040
        %1115 = vmatprep.subr.mxu0 0.0
        %1116 = vmatpush2.msra.mxu0 %v1039
        %1117 = vmatprep.subr.mxu0 0.0
        %1118 = vmatpush2.msra.mxu0 %v1038
        %1119 = vmatprep.subr.mxu0 0.0
        %1120 = vmatpush2.msra.mxu0 %v1037
        %1121 = vmatprep.subr.mxu0 0.0
        %1122 = vmatpush2.msra.mxu0 %v1036
        %1123 = vmatprep.mubr.f32.mxu0 %v1005
        %1124 = vmatmul.mubr.f32.gmra.mxu0 %v1004
        %v1125 = vpop.f32.mrf.mxu0
        %v1126 = vadd.f32 %v1057, %v1125
        %v1127 = vpop.f32.mrf.mxu0
        %1128 = vmatprep.mubr.f32.mxu0 %v1007
        %1129 = vmatmul.mubr.f32.gmra.mxu0 %v1006
        %v1130 = vpop.f32.mrf.mxu0
        %v1131 = vadd.f32 %v1057, %v1130
        %v1132 = vpop.f32.mrf.mxu0
        %1133 = vmatprep.mubr.f32.mxu0 %v1009
        %1134 = vmatmul.mubr.f32.gmra.mxu0 %v1008
        %v1135 = vpop.f32.mrf.mxu0
        %v1136 = vadd.f32 %v1057, %v1135
        %v1137 = vpop.f32.mrf.mxu0
        %1138 = vmatprep.mubr.f32.mxu0 %v1011
        %1139 = vmatmul.mubr.f32.gmra.mxu0 %v1010
        %v1140 = vpop.f32.mrf.mxu0
        %v1141 = vadd.f32 %v1057, %v1140
        %v1142 = vpop.f32.mrf.mxu0
        %1143 = vmatprep.mubr.f32.mxu0 %v1013
        %1144 = vmatmul.mubr.f32.gmra.mxu0 %v1012
        %v1145 = vpop.f32.mrf.mxu0
        %v1146 = vadd.f32 %v1057, %v1145
        %v1147 = vpop.f32.mrf.mxu0
        %1148 = vmatprep.mubr.f32.mxu0 %v1015
        %1149 = vmatmul.mubr.f32.gmra.mxu0 %v1014
        %v1150 = vpop.f32.mrf.mxu0
        %v1151 = vadd.f32 %v1057, %v1150
        %v1152 = vpop.f32.mrf.mxu0
        %1153 = vmatprep.mubr.f32.mxu0 %v1017
        %1154 = vmatmul.mubr.f32.gmra.mxu0 %v1016
        %v1155 = vpop.f32.mrf.mxu0
        %v1156 = vadd.f32 %v1057, %v1155
        %v1157 = vpop.f32.mrf.mxu0
        %1158 = vmatprep.mubr.f32.mxu0 %v1019
        %1159 = vmatmul.mubr.f32.gmra.mxu0 %v1018
        %v1160 = vpop.f32.mrf.mxu0
        %v1161 = vadd.f32 %v1057, %v1160
        %v1162 = vpop.f32.mrf.mxu0
        %1163 = vdwg.mxu0
        %vm1164 = vcmask 113664
        %v1165 = vsel %vm1164, %v902, -inf
        %v1166 = vsel %vm1164, %v907, -inf
        %v1167 = vsel %vm1164, %v912, -inf
        %v1168 = vsel %vm1164, %v917, -inf
        %v1169 = vsel %vm1164, %v922, -inf
        %v1170 = vmax.f32 %v1165, %v1169
        %v1171 = vsel %vm1164, %v927, -inf
        %v1172 = vmax.f32 %v1166, %v1171
        %v1173 = vsel %vm1164, %v932, -inf
        %v1174 = vmax.f32 %v1167, %v1173
        %v1175 = vsel %vm1164, %v937, -inf
        %v1176 = vmax.f32 %v1168, %v1175
        %v1177 = vmax.f32 %v1170, %v1172
        %v1178 = vmax.f32 %v1174, %v1176
        %v1179 = vmax.f32 %v1177, %v1178
        %v1180 = vrot.slane %v1179, 4
        %v1181 = vmax.f32 %v1179, %v1180
        %v1182 = vrot.slane %v1181, 2
        %v1183 = vmax.f32 %v1181, %v1182
        %v1184 = vrot.slane %v1183, 1
        %v1185 = vmax.f32 %v1183, %v1184
        %v1186 = vsub.f32 %v902, %v1185
        %v1187 = vsub.f32 %v907, %v1185
        %v1188 = vsub.f32 %v912, %v1185
        %v1189 = vsub.f32 %v917, %v1185
        %v1190 = vsub.f32 %v922, %v1185
        %v1191 = vsub.f32 %v927, %v1185
        %v1192 = vsub.f32 %v932, %v1185
        %v1193 = vsub.f32 %v937, %v1185
        %v1194 = vmul.f32 %v1186, 1.442695
        %v1195 = vpow.pop %v1194
        %v1196 = vmul.f32 %v1187, 1.442695
        %v1197 = vpow.pop %v1196
        %v1198 = vmul.f32 %v1188, 1.442695
        %v1199 = vpow.pop %v1198
        %v1200 = vmul.f32 %v1189, 1.442695
        %v1201 = vpow.pop %v1200
        %v1202 = vmul.f32 %v1190, 1.442695
        %v1203 = vpow.pop %v1202
        %v1204 = vmul.f32 %v1191, 1.442695
        %v1205 = vpow.pop %v1204
        %v1206 = vmul.f32 %v1192, 1.442695
        %v1207 = vpow.pop %v1206
        %v1208 = vmul.f32 %v1193, 1.442695
        %v1209 = vpow.pop %v1208
        %v1210 = vsel %vm1164, %v1195, 0.0
        %v1211 = vsel %vm1164, %v1197, 0.0
        %v1212 = vadd.f32 %v1210, %v1211
        %v1213 = vsel %vm1164, %v1199, 0.0
        %v1214 = vadd.f32 %v1212, %v1213
        %v1215 = vsel %vm1164, %v1201, 0.0
        %v1216 = vadd.f32 %v1214, %v1215
        %v1217 = vsel %vm1164, %v1203, 0.0
        %v1218 = vadd.f32 %v1216, %v1217
        %v1219 = vsel %vm1164, %v1205, 0.0
        %v1220 = vadd.f32 %v1218, %v1219
        %v1221 = vsel %vm1164, %v1207, 0.0
        %v1222 = vadd.f32 %v1220, %v1221
        %v1223 = vsel %vm1164, %v1209, 0.0
        %v1224 = vadd.f32 %v1222, %v1223
        %v1225 = vrot.slane %v1224, 4
        %v1226 = vadd.f32 %v1224, %v1225
        %v1227 = vrot.slane %v1226, 2
        %v1228 = vadd.f32 %v1226, %v1227
        %v1229 = vrot.slane %v1228, 1
        %v1230 = vadd.f32 %v1228, %v1229
        %v1231 = vrcp.pop %v1230
        %v1232 = vmul.f32 1.0, %v1231
        %v1233 = vmul.f32 %v1195, %v1232
        %v1234 = vmul.f32 %v1197, %v1232
        %v1235 = vmul.f32 %v1199, %v1232
        %v1236 = vmul.f32 %v1201, %v1232
        %v1237 = vmul.f32 %v1203, %v1232
        %v1238 = vmul.f32 %v1205, %v1232
        %v1239 = vmul.f32 %v1207, %v1232
        %v1240 = vmul.f32 %v1209, %v1232
        %v1241 = vmul.f32 %v1233, %v1126
        %v1242 = vmul.f32 %v1234, %v1131
        %v1243 = vmul.f32 %v1235, %v1136
        %v1244 = vmul.f32 %v1236, %v1141
        %v1245 = vmul.f32 %v1237, %v1146
        %v1246 = vmul.f32 %v1238, %v1151
        %v1247 = vmul.f32 %v1239, %v1156
        %v1248 = vmul.f32 %v1240, %v1161
        %v1249 = vsel %vm1164, %v1241, 0.0
        %v1250 = vsel %vm1164, %v1242, 0.0
        %v1251 = vadd.f32 %v1249, %v1250
        %v1252 = vsel %vm1164, %v1243, 0.0
        %v1253 = vadd.f32 %v1251, %v1252
        %v1254 = vsel %vm1164, %v1244, 0.0
        %v1255 = vadd.f32 %v1253, %v1254
        %v1256 = vsel %vm1164, %v1245, 0.0
        %v1257 = vadd.f32 %v1255, %v1256
        %v1258 = vsel %vm1164, %v1246, 0.0
        %v1259 = vadd.f32 %v1257, %v1258
        %v1260 = vsel %vm1164, %v1247, 0.0
        %v1261 = vadd.f32 %v1259, %v1260
        %v1262 = vsel %vm1164, %v1248, 0.0
        %v1263 = vadd.f32 %v1261, %v1262
        %v1264 = vrot.slane %v1263, 4
        %v1265 = vadd.f32 %v1263, %v1264
        %v1266 = vrot.slane %v1265, 2
        %v1267 = vadd.f32 %v1265, %v1266
        %v1268 = vrot.slane %v1267, 1
        %v1269 = vadd.f32 %v1267, %v1268
        %1278 = vrot.lane.b32.xlu0 %v1126, 114
        %v1279 = vpop.permute.xlu0 %1278
        %1280 = vrot.lane.b32.xlu0 %v1131, 114
        %v1281 = vpop.permute.xlu0 %1280
        %1282 = vrot.lane.b32.xlu0 %v1136, 114
        %v1283 = vpop.permute.xlu0 %1282
        %1284 = vrot.lane.b32.xlu0 %v1141, 114
        %v1285 = vpop.permute.xlu0 %1284
        %1286 = vrot.lane.b32.xlu0 %v1146, 114
        %v1287 = vpop.permute.xlu0 %1286
        %1288 = vrot.lane.b32.xlu0 %v1151, 114
        %v1289 = vpop.permute.xlu0 %1288
        %1290 = vrot.lane.b32.xlu0 %v1156, 114
        %v1291 = vpop.permute.xlu0 %1290
        %1292 = vrot.lane.b32.xlu0 %v1161, 114
        %v1293 = vpop.permute.xlu0 %1292
        %v1302 = vmul.f32 %v1233, %v1279
        %v1303 = vmul.f32 %v1234, %v1281
        %v1304 = vmul.f32 %v1235, %v1283
        %v1305 = vmul.f32 %v1236, %v1285
        %v1306 = vmul.f32 %v1237, %v1287
        %v1307 = vmul.f32 %v1238, %v1289
        %v1308 = vmul.f32 %v1239, %v1291
        %v1309 = vmul.f32 %v1240, %v1293
        %v1310 = vsel %vm1164, %v1302, 0.0
        %v1311 = vsel %vm1164, %v1303, 0.0
        %v1312 = vadd.f32 %v1310, %v1311
        %v1313 = vsel %vm1164, %v1304, 0.0
        %v1314 = vadd.f32 %v1312, %v1313
        %v1315 = vsel %vm1164, %v1305, 0.0
        %v1316 = vadd.f32 %v1314, %v1315
        %v1317 = vsel %vm1164, %v1306, 0.0
        %v1318 = vadd.f32 %v1316, %v1317
        %v1319 = vsel %vm1164, %v1307, 0.0
        %v1320 = vadd.f32 %v1318, %v1319
        %v1321 = vsel %vm1164, %v1308, 0.0
        %v1322 = vadd.f32 %v1320, %v1321
        %v1323 = vsel %vm1164, %v1309, 0.0
        %v1324 = vadd.f32 %v1322, %v1323
        %v1325 = vrot.slane %v1324, 4
        %v1326 = vadd.f32 %v1324, %v1325
        %v1327 = vrot.slane %v1326, 2
        %v1328 = vadd.f32 %v1326, %v1327
        %v1329 = vrot.slane %v1328, 1
        %v1330 = vadd.f32 %v1328, %v1329
        %v1331 = vsel %vm1164, %v1233, 0.0
        %v1332 = vsel %vm1164, %v1234, 0.0
        %v1333 = vadd.f32 %v1331, %v1332
        %v1334 = vsel %vm1164, %v1235, 0.0
        %v1335 = vadd.f32 %v1333, %v1334
        %v1336 = vsel %vm1164, %v1236, 0.0
        %v1337 = vadd.f32 %v1335, %v1336
        %v1338 = vsel %vm1164, %v1237, 0.0
        %v1339 = vadd.f32 %v1337, %v1338
        %v1340 = vsel %vm1164, %v1238, 0.0
        %v1341 = vadd.f32 %v1339, %v1340
        %v1342 = vsel %vm1164, %v1239, 0.0
        %v1343 = vadd.f32 %v1341, %v1342
        %v1344 = vsel %vm1164, %v1240, 0.0
        %v1345 = vadd.f32 %v1343, %v1344
        %v1346 = vrot.slane %v1345, 4
        %v1347 = vadd.f32 %v1345, %v1346
        %v1348 = vrot.slane %v1347, 2
        %v1349 = vadd.f32 %v1347, %v1348
        %v1350 = vrot.slane %v1349, 1
        %v1351 = vadd.f32 %v1349, %v1350
        %v1352 = vmul.f32 %v1351, 0.015625
        %v1353 = vsel %vm1164, %v1233, -inf
        %v1354 = vsel %vm1164, %v1234, -inf
        %v1355 = vsel %vm1164, %v1235, -inf
        %v1356 = vsel %vm1164, %v1236, -inf
        %v1357 = vsel %vm1164, %v1237, -inf
        %v1358 = vmax.f32 %v1353, %v1357
        %v1359 = vsel %vm1164, %v1238, -inf
        %v1360 = vmax.f32 %v1354, %v1359
        %v1361 = vsel %vm1164, %v1239, -inf
        %v1362 = vmax.f32 %v1355, %v1361
        %v1363 = vsel %vm1164, %v1240, -inf
        %v1364 = vmax.f32 %v1356, %v1363
        %v1365 = vmax.f32 %v1358, %v1360
        %v1366 = vmax.f32 %v1362, %v1364
        %v1367 = vmax.f32 %v1365, %v1366
        %v1368 = vrot.slane %v1367, 4
        %v1369 = vmax.f32 %v1367, %v1368
        %v1370 = vrot.slane %v1369, 2
        %v1371 = vmax.f32 %v1369, %v1370
        %v1372 = vrot.slane %v1371, 1
        %v1373 = vmax.f32 %v1371, %v1372
        %v1374 = vand.u32 2147483647, %v1269
        %v1375 = vand.u32 2147483647, %v1330
        %vm1376 = vcmp.gt.f32.partialorder %v1375, %v1374
        %v1377 = vsel %vm1376, %v1374, %v1375
        %v1378 = vsel %vm1376, %v1375, %v1374
        %v1379 = vmax.f32 %v1378, 1e-30
        %v1380 = vrcp.pop %v1379
        %v1381 = vmul.f32 %v1377, %v1380
        %vm1382 = vcmp.gt.f32.partialorder %v1381, 0.41421357
        %v1383 = vsub.f32 %v1381, 1.0
        %v1384 = vadd.f32 %v1381, 1.0
        %v1385 = vrcp.pop %v1384
        %v1386 = vmul.f32 %v1383, %v1385
        %v1387 = vsel %vm1382, %v1386, %v1381
        %v1388 = vmul.f32 %v1387, %v1387
        %v1389 = vmul.f32 %v1388, 0.080537446
        %v1390 = vsub.f32 %v1389, 0.13877685
        %v1391 = vmul.f32 %v1390, %v1388
        %v1392 = vadd.f32 %v1391, 0.19977711
        %v1393 = vmul.f32 %v1392, %v1388
        %v1394 = vsub.f32 %v1393, 0.3333295
        %v1395 = vmul.f32 %v1394, %v1388
        %v1396 = vmul.f32 %v1395, %v1387
        %v1397 = vadd.f32 %v1396, %v1387
        %v1398 = vadd.f32 %v1397, 0.7853982
        %v1399 = vsel %vm1382, %v1398, %v1397
        %v1400 = vsub.f32 1.5707964, %v1399
        %v1401 = vsel %vm1376, %v1400, %v1399
        %vm1402 = vcmp.lt.f32.partialorder %v1269, 0.0
        %v1403 = vsub.f32 3.1415927, %v1401
        %v1404 = vsel %vm1402, %v1403, %v1401
        %vm1405 = vcmp.lt.f32.partialorder %v1330, 0.0
        %v1406 = vsub.f32 0.0, %v1404
        %v1407 = vsel %vm1405, %v1406, %v1404
        %v1408 = vld [vmem:[%s5] sm:$0xff]
        %v1409 = vld [vmem:[%s5 + $0x8] sm:$0x3f]
        %v1410 = vld [vmem:[%s5 + $0xe] sm:$0xff]
        %v1411 = vld [vmem:[%s5 + $0x16] sm:$0x3f]
        %v1413 = vsel %vm1164, %v1352, 0
        %vm1415 = vcmask 1045504
        %v1417 = vsel %vm1415, %v1411, 0
        %1419 = vmatprep.subr.mxu0 0.0
        %1420 = vmatpush1.msra.mxu0 0.0
        %1421 = vmatprep.subr.mxu0 0.0
        %1422 = vmatpush1.msra.mxu0 0.0
        %1423 = vmatprep.subr.mxu0 0.0
        %1424 = vmatpush1.msra.mxu0 0.0
        %1425 = vmatprep.subr.mxu0 0.0
        %1426 = vmatpush1.msra.mxu0 0.0
        %1427 = vmatprep.subr.mxu0 0.0
        %1428 = vmatpush1.msra.mxu0 0.0
        %1429 = vmatprep.subr.mxu0 0.0
        %1430 = vmatpush1.msra.mxu0 0.0
        %1431 = vmatprep.subr.mxu0 0.0
        %1432 = vmatpush1.msra.mxu0 0.0
        %1433 = vmatprep.subr.mxu0 0.0
        %1434 = vmatpush1.msra.mxu0 0.0
        %1435 = vmatprep.subr.mxu0 0.0
        %1436 = vmatpush1.msra.mxu0 0.0
        %1437 = vmatprep.subr.mxu0 0.0
        %1438 = vmatpush1.msra.mxu0 0.0
        %1439 = vmatprep.subr.mxu0 0.0
        %1440 = vmatpush1.msra.mxu0 0.0
        %1441 = vmatprep.subr.mxu0 0.0
        %1442 = vmatpush1.msra.mxu0 0.0
        %1443 = vmatprep.subr.mxu0 0.0
        %1444 = vmatpush1.msra.mxu0 0.0
        %1445 = vmatprep.subr.mxu0 0.0
        %1446 = vmatpush1.msra.mxu0 0.0
        %1447 = vmatprep.subr.mxu0 0.0
        %1448 = vmatpush1.msra.mxu0 %v1417
        %1449 = vmatprep.subr.mxu0 0.0
        %1450 = vmatpush1.msra.mxu0 %v1410
        %1451 = vmatprep.subr.mxu0 0.0
        %1452 = vmatpush2.msra.mxu0 0.0
        %1453 = vmatprep.subr.mxu0 0.0
        %1454 = vmatpush2.msra.mxu0 0.0
        %1455 = vmatprep.subr.mxu0 0.0
        %1456 = vmatpush2.msra.mxu0 0.0
        %1457 = vmatprep.subr.mxu0 0.0
        %1458 = vmatpush2.msra.mxu0 0.0
        %1459 = vmatprep.subr.mxu0 0.0
        %1460 = vmatpush2.msra.mxu0 0.0
        %1461 = vmatprep.subr.mxu0 0.0
        %1462 = vmatpush2.msra.mxu0 0.0
        %1463 = vmatprep.subr.mxu0 0.0
        %1464 = vmatpush2.msra.mxu0 0.0
        %1465 = vmatprep.subr.mxu0 0.0
        %1466 = vmatpush2.msra.mxu0 0.0
        %1467 = vmatprep.subr.mxu0 0.0
        %1468 = vmatpush2.msra.mxu0 0.0
        %1469 = vmatprep.subr.mxu0 0.0
        %1470 = vmatpush2.msra.mxu0 0.0
        %1471 = vmatprep.subr.mxu0 0.0
        %1472 = vmatpush2.msra.mxu0 0.0
        %1473 = vmatprep.subr.mxu0 0.0
        %1474 = vmatpush2.msra.mxu0 0.0
        %1475 = vmatprep.subr.mxu0 0.0
        %1476 = vmatpush2.msra.mxu0 0.0
        %1477 = vmatprep.subr.mxu0 0.0
        %1478 = vmatpush2.msra.mxu0 0.0
        %1479 = vmatprep.subr.mxu0 0.0
        %1480 = vmatpush2.msra.mxu0 0.0
        %1481 = vmatprep.subr.mxu0 0.0
        %1482 = vmatpush2.msra.mxu0 0.0
        %1483 = vmatprep.mubr.f32.mxu0 0.0
        %1484 = vmatmul.mubr.f32.gmra.mxu0 %v1413
        %v1485 = vpop.f32.mrf.mxu0
        %v1486 = vadd.f32 0.0, %v1485
        %v1487 = vpop.f32.mrf.mxu0
        %1488 = vdwg.mxu0
        %v1490 = vsel %vm1164, %v1407, 0
        %v1493 = vsel %vm1415, %v1409, 0
        %1495 = vmatprep.subr.mxu0 0.0
        %1496 = vmatpush1.msra.mxu0 0.0
        %1497 = vmatprep.subr.mxu0 0.0
        %1498 = vmatpush1.msra.mxu0 0.0
        %1499 = vmatprep.subr.mxu0 0.0
        %1500 = vmatpush1.msra.mxu0 0.0
        %1501 = vmatprep.subr.mxu0 0.0
        %1502 = vmatpush1.msra.mxu0 0.0
        %1503 = vmatprep.subr.mxu0 0.0
        %1504 = vmatpush1.msra.mxu0 0.0
        %1505 = vmatprep.subr.mxu0 0.0
        %1506 = vmatpush1.msra.mxu0 0.0
        %1507 = vmatprep.subr.mxu0 0.0
        %1508 = vmatpush1.msra.mxu0 0.0
        %1509 = vmatprep.subr.mxu0 0.0
        %1510 = vmatpush1.msra.mxu0 0.0
        %1511 = vmatprep.subr.mxu0 0.0
        %1512 = vmatpush1.msra.mxu0 0.0
        %1513 = vmatprep.subr.mxu0 0.0
        %1514 = vmatpush1.msra.mxu0 0.0
        %1515 = vmatprep.subr.mxu0 0.0
        %1516 = vmatpush1.msra.mxu0 0.0
        %1517 = vmatprep.subr.mxu0 0.0
        %1518 = vmatpush1.msra.mxu0 0.0
        %1519 = vmatprep.subr.mxu0 0.0
        %1520 = vmatpush1.msra.mxu0 0.0
        %1521 = vmatprep.subr.mxu0 0.0
        %1522 = vmatpush1.msra.mxu0 0.0
        %1523 = vmatprep.subr.mxu0 0.0
        %1524 = vmatpush1.msra.mxu0 %v1493
        %1525 = vmatprep.subr.mxu0 0.0
        %1526 = vmatpush1.msra.mxu0 %v1408
        %1527 = vmatprep.subr.mxu0 0.0
        %1528 = vmatpush2.msra.mxu0 0.0
        %1529 = vmatprep.subr.mxu0 0.0
        %1530 = vmatpush2.msra.mxu0 0.0
        %1531 = vmatprep.subr.mxu0 0.0
        %1532 = vmatpush2.msra.mxu0 0.0
        %1533 = vmatprep.subr.mxu0 0.0
        %1534 = vmatpush2.msra.mxu0 0.0
        %1535 = vmatprep.subr.mxu0 0.0
        %1536 = vmatpush2.msra.mxu0 0.0
        %1537 = vmatprep.subr.mxu0 0.0
        %1538 = vmatpush2.msra.mxu0 0.0
        %1539 = vmatprep.subr.mxu0 0.0
        %1540 = vmatpush2.msra.mxu0 0.0
        %1541 = vmatprep.subr.mxu0 0.0
        %1542 = vmatpush2.msra.mxu0 0.0
        %1543 = vmatprep.subr.mxu0 0.0
        %1544 = vmatpush2.msra.mxu0 0.0
        %1545 = vmatprep.subr.mxu0 0.0
        %1546 = vmatpush2.msra.mxu0 0.0
        %1547 = vmatprep.subr.mxu0 0.0
        %1548 = vmatpush2.msra.mxu0 0.0
        %1549 = vmatprep.subr.mxu0 0.0
        %1550 = vmatpush2.msra.mxu0 0.0
        %1551 = vmatprep.subr.mxu0 0.0
        %1552 = vmatpush2.msra.mxu0 0.0
        %1553 = vmatprep.subr.mxu0 0.0
        %1554 = vmatpush2.msra.mxu0 0.0
        %1555 = vmatprep.subr.mxu0 0.0
        %1556 = vmatpush2.msra.mxu0 0.0
        %1557 = vmatprep.subr.mxu0 0.0
        %1558 = vmatpush2.msra.mxu0 0.0
        %1559 = vmatprep.mubr.f32.mxu0 0.0
        %1560 = vmatmul.mubr.f32.gmra.mxu0 %v1490
        %v1561 = vpop.f32.mrf.mxu0
        %v1562 = vadd.f32 %v1486, %v1561
        %v1563 = vpop.f32.mrf.mxu0
        %1564 = vdwg.mxu0
        %v1565 = vld [vmem:[%s5 + $0x1c] sm:$0xff]
        %v1566 = vld [vmem:[%s5 + $0x24] sm:$0x3f]
        %v1568 = vsel %vm1164, %v1373, 0
        %v1571 = vsel %vm1415, %v1566, 0
        %1573 = vmatprep.subr.mxu0 0.0
        %1574 = vmatpush1.msra.mxu0 0.0
        %1575 = vmatprep.subr.mxu0 0.0
        %1576 = vmatpush1.msra.mxu0 0.0
        %1577 = vmatprep.subr.mxu0 0.0
        %1578 = vmatpush1.msra.mxu0 0.0
        %1579 = vmatprep.subr.mxu0 0.0
        %1580 = vmatpush1.msra.mxu0 0.0
        %1581 = vmatprep.subr.mxu0 0.0
        %1582 = vmatpush1.msra.mxu0 0.0
        %1583 = vmatprep.subr.mxu0 0.0
        %1584 = vmatpush1.msra.mxu0 0.0
        %1585 = vmatprep.subr.mxu0 0.0
        %1586 = vmatpush1.msra.mxu0 0.0
        %1587 = vmatprep.subr.mxu0 0.0
        %1588 = vmatpush1.msra.mxu0 0.0
        %1589 = vmatprep.subr.mxu0 0.0
        %1590 = vmatpush1.msra.mxu0 0.0
        %1591 = vmatprep.subr.mxu0 0.0
        %1592 = vmatpush1.msra.mxu0 0.0
        %1593 = vmatprep.subr.mxu0 0.0
        %1594 = vmatpush1.msra.mxu0 0.0
        %1595 = vmatprep.subr.mxu0 0.0
        %1596 = vmatpush1.msra.mxu0 0.0
        %1597 = vmatprep.subr.mxu0 0.0
        %1598 = vmatpush1.msra.mxu0 0.0
        %1599 = vmatprep.subr.mxu0 0.0
        %1600 = vmatpush1.msra.mxu0 0.0
        %1601 = vmatprep.subr.mxu0 0.0
        %1602 = vmatpush1.msra.mxu0 %v1571
        %1603 = vmatprep.subr.mxu0 0.0
        %1604 = vmatpush1.msra.mxu0 %v1565
        %1605 = vmatprep.subr.mxu0 0.0
        %1606 = vmatpush2.msra.mxu0 0.0
        %1607 = vmatprep.subr.mxu0 0.0
        %1608 = vmatpush2.msra.mxu0 0.0
        %1609 = vmatprep.subr.mxu0 0.0
        %1610 = vmatpush2.msra.mxu0 0.0
        %1611 = vmatprep.subr.mxu0 0.0
        %1612 = vmatpush2.msra.mxu0 0.0
        %1613 = vmatprep.subr.mxu0 0.0
        %1614 = vmatpush2.msra.mxu0 0.0
        %1615 = vmatprep.subr.mxu0 0.0
        %1616 = vmatpush2.msra.mxu0 0.0
        %1617 = vmatprep.subr.mxu0 0.0
        %1618 = vmatpush2.msra.mxu0 0.0
        %1619 = vmatprep.subr.mxu0 0.0
        %1620 = vmatpush2.msra.mxu0 0.0
        %1621 = vmatprep.subr.mxu0 0.0
        %1622 = vmatpush2.msra.mxu0 0.0
        %1623 = vmatprep.subr.mxu0 0.0
        %1624 = vmatpush2.msra.mxu0 0.0
        %1625 = vmatprep.subr.mxu0 0.0
        %1626 = vmatpush2.msra.mxu0 0.0
        %1627 = vmatprep.subr.mxu0 0.0
        %1628 = vmatpush2.msra.mxu0 0.0
        %1629 = vmatprep.subr.mxu0 0.0
        %1630 = vmatpush2.msra.mxu0 0.0
        %1631 = vmatprep.subr.mxu0 0.0
        %1632 = vmatpush2.msra.mxu0 0.0
        %1633 = vmatprep.subr.mxu0 0.0
        %1634 = vmatpush2.msra.mxu0 0.0
        %1635 = vmatprep.subr.mxu0 0.0
        %1636 = vmatpush2.msra.mxu0 0.0
        %1637 = vmatprep.mubr.f32.mxu0 0.0
        %1638 = vmatmul.mubr.f32.gmra.mxu0 %v1568
        %v1639 = vpop.f32.mrf.mxu0
        %v1640 = vadd.f32 0.0, %v1639
        %v1641 = vpop.f32.mrf.mxu0
        %1642 = vdwg.mxu0
        %v1643 = vadd.f32 %v1562, %v1640
        %v1644 = vld [vmem:[%s6] sm:$0x1]
        %v1645 = vadd.f32 %v1643, %v1644
        %v1646 = vmul.f32 %v1645, 0.5
        %v1647 = vmul.f32 %v1645, 0.70710677
        %v1648 = verf.f32.pop %v1647
        %v1649 = vadd.f32 %v1648, 1.0
        %v1650 = vmul.f32 %v1646, %v1649
        %v1651 = vld [vmem:[%s7] sm:$0xff]
        %v1652 = vld [vmem:[%s7 + $0x8] sm:$0xff]
        %v1653 = vld [vmem:[%s7 + $0x10] sm:$0xff]
        %v1654 = vld [vmem:[%s7 + $0x18] sm:$0xff]
        %v1655 = vld [vmem:[%s8] sm:$0x1]
        %v1657 = vsel %vm479, %v1650, 0
        %1659 = vmatprep.subr.mxu0 0.0
        %1660 = vmatpush1.msra.mxu0 0.0
        %1661 = vmatprep.subr.mxu0 0.0
        %1662 = vmatpush1.msra.mxu0 0.0
        %1663 = vmatprep.subr.mxu0 0.0
        %1664 = vmatpush1.msra.mxu0 0.0
        %1665 = vmatprep.subr.mxu0 0.0
        %1666 = vmatpush1.msra.mxu0 0.0
        %1667 = vmatprep.subr.mxu0 0.0
        %1668 = vmatpush1.msra.mxu0 0.0
        %1669 = vmatprep.subr.mxu0 0.0
        %1670 = vmatpush1.msra.mxu0 0.0
        %1671 = vmatprep.subr.mxu0 0.0
        %1672 = vmatpush1.msra.mxu0 0.0
        %1673 = vmatprep.subr.mxu0 0.0
        %1674 = vmatpush1.msra.mxu0 0.0
        %1675 = vmatprep.subr.mxu0 0.0
        %1676 = vmatpush1.msra.mxu0 0.0
        %1677 = vmatprep.subr.mxu0 0.0
        %1678 = vmatpush1.msra.mxu0 0.0
        %1679 = vmatprep.subr.mxu0 0.0
        %1680 = vmatpush1.msra.mxu0 0.0
        %1681 = vmatprep.subr.mxu0 0.0
        %1682 = vmatpush1.msra.mxu0 0.0
        %1683 = vmatprep.subr.mxu0 0.0
        %1684 = vmatpush1.msra.mxu0 %v1654
        %1685 = vmatprep.subr.mxu0 0.0
        %1686 = vmatpush1.msra.mxu0 %v1653
        %1687 = vmatprep.subr.mxu0 0.0
        %1688 = vmatpush1.msra.mxu0 %v1652
        %1689 = vmatprep.subr.mxu0 0.0
        %1690 = vmatpush1.msra.mxu0 %v1651
        %1691 = vmatprep.subr.mxu0 0.0
        %1692 = vmatpush2.msra.mxu0 0.0
        %1693 = vmatprep.subr.mxu0 0.0
        %1694 = vmatpush2.msra.mxu0 0.0
        %1695 = vmatprep.subr.mxu0 0.0
        %1696 = vmatpush2.msra.mxu0 0.0
        %1697 = vmatprep.subr.mxu0 0.0
        %1698 = vmatpush2.msra.mxu0 0.0
        %1699 = vmatprep.subr.mxu0 0.0
        %1700 = vmatpush2.msra.mxu0 0.0
        %1701 = vmatprep.subr.mxu0 0.0
        %1702 = vmatpush2.msra.mxu0 0.0
        %1703 = vmatprep.subr.mxu0 0.0
        %1704 = vmatpush2.msra.mxu0 0.0
        %1705 = vmatprep.subr.mxu0 0.0
        %1706 = vmatpush2.msra.mxu0 0.0
        %1707 = vmatprep.subr.mxu0 0.0
        %1708 = vmatpush2.msra.mxu0 0.0
        %1709 = vmatprep.subr.mxu0 0.0
        %1710 = vmatpush2.msra.mxu0 0.0
        %1711 = vmatprep.subr.mxu0 0.0
        %1712 = vmatpush2.msra.mxu0 0.0
        %1713 = vmatprep.subr.mxu0 0.0
        %1714 = vmatpush2.msra.mxu0 0.0
        %1715 = vmatprep.subr.mxu0 0.0
        %1716 = vmatpush2.msra.mxu0 0.0
        %1717 = vmatprep.subr.mxu0 0.0
        %1718 = vmatpush2.msra.mxu0 0.0
        %1719 = vmatprep.subr.mxu0 0.0
        %1720 = vmatpush2.msra.mxu0 0.0
        %1721 = vmatprep.subr.mxu0 0.0
        %1722 = vmatpush2.msra.mxu0 0.0
        %1723 = vmatprep.mubr.f32.mxu0 0.0
        %1724 = vmatmul.mubr.f32.gmra.mxu0 %v1657
        %v1725 = vpop.f32.mrf.mxu0
        %v1726 = vadd.f32 %v1655, %v1725
        %v1727 = vpop.f32.mrf.mxu0
        %1728 = vdwg.mxu0
        %vm1729 = vcmask 16384
        %v1730 = vsel %vm1729, %v1726, -inf
        %1731 = vmax.xlane.f32.xlu0 %v1730
        %v1732 = vpop.xlane.xlu0 %1731
        %v1733 = vsub.f32 %v1726, %v1732
        %v1734 = vmul.f32 %v1733, 1.442695
        %v1735 = vpow.pop %v1734
        %v1736 = vsel %vm1729, %v1735, 0.0
        %1737 = vadd.xlane.f32.xlu0 %v1736
        %v1738 = vpop.xlane.xlu0 %1737
        %v1739 = vrcp.pop %v1738
        %v1740 = vmul.f32 %v1735, %v1739
        %1742 = vset.pattern.permute.xlu0 0
        %1743 = vperm.xlu0 %1742, %v1740
        %v1744 = vpop.permute.xlu0 %1743
        %v1746 = vmul.f32 %v1744, %v1407
        %1747 = vset.pattern.permute.xlu0 1
        %1748 = vperm.xlu0 %1747, %v1740
        %v1749 = vpop.permute.xlu0 %1748
        %v1751 = vmul.f32 %v1749, %v1352
        %v1752 = vadd.f32 %v1746, %v1751
        %1753 = vset.pattern.permute.xlu0 2
        %1754 = vperm.xlu0 %1753, %v1740
        %v1755 = vpop.permute.xlu0 %1754
        %v1757 = vmul.f32 %v1755, %v1373
        %v1758 = vadd.f32 %v1752, %v1757
        %vm1759 = vcmask 106496
        %1760 = vst.msk [vmem:[%s324] sm:$0x1] %vm1759, %v1758
        %s1761 = sand.u32 %s225, 1
        %s1762 = scalar_lea.sflag [#allocation3], %s1761
        %s1763 = sand.u32 %s225, 1
        %s1764 = scalar_lea.vmem [#allocation2], %s1763
        // Predicated region
        $region57: #{tpu_custom_call.1} parent=55 // pred_check
          %p1765 = pneg %p235
        $region58: #{tpu_custom_call.1} parent=55 // pred_check_branch
          %1767 = sbr.rel (%p1765) target = $region60
        $region59: #{tpu_custom_call.1} parent=55 // pred_region
          %s1769 = ssub.s32 16, 16
          %1770 = vsyncadd %s1762, %s1769
          %s1771 = smul.addr %s23, 16
          %s1772 = scalar_lea.hbm %s9, %s1771
          %s1774 = sshll.u32 %s1764, 4
          %s1775 = int_to_ptr.vmem [resolvable:$true] %s1774
          %1777 = dma.vmem_to_hbm [thread:$0]  %s1775, 16, %s1772, %s1762
        $region60: #{tpu_custom_call.1} parent=55 // pred_fallthru
          _
      $region56: #{tpu_custom_call.1} parent=5 // pred_fallthru
        _
      %p1778 = scmp.le.s32.totalorder 2, %s18
      // Predicated region
      $region61: #{tpu_custom_call.1} parent=5 // pred_check
        %p1779 = pneg %p1778
      $region62: #{tpu_custom_call.1} parent=5 // pred_check_branch
        %1781 = sbr.rel (%p1779) target = $region64
      $region63: #{tpu_custom_call.1} parent=5 // pred_region
        %s1782 = ssub.s32 %s18, 2
        // Predicated region
        $region65: #{tpu_custom_call.1} parent=63 // pred_check
          %p1783 = pneg %p241
        $region66: #{tpu_custom_call.1} parent=63 // pred_check_branch
          %1785 = sbr.rel (%p1783) target = $region68
        $region67: #{tpu_custom_call.1} parent=63 // pred_region
          %s1786 = sand.u32 %s226, 1
          %s1787 = scalar_lea.sflag [#allocation3], %s1786
          %s1788 = sand.u32 %s226, 1
          %s1789 = scalar_lea.vmem [#allocation2], %s1788
          %1790 = dma.done %s1787, 16
        $region68: #{tpu_custom_call.1} parent=63 // pred_fallthru
          _
      $region64: #{tpu_custom_call.1} parent=5 // pred_fallthru
        _
    $region6: #{tpu_custom_call.1} parent=1 // loop_footer
      %s22 = sadd.s32 1, %s18
    $region7: #{tpu_custom_call.1} parent=1 // loop_footer_branch
      %17 = sbr.rel target = $region3
    $region8: #{tpu_custom_call.1} parent=1 // loop_exit
      _
    %1791 = vsyncpa [#allocation3], 1
    %s1792 = scalar_lea.sflag [#allocation3], 1
    %1793 = vsyncpa %s1792, 1

</llo_original>
